<compile_context>
chip_gen: v6e
topology: v6e:2x2x1
jax: 0.10.0
libtpu: 0.0.40
codegen_flags: <defaults>
</compile_context>

<pallas_src>
import functools

import jax
import jax.numpy as jnp
from jax.experimental import pallas as pl
from jax.experimental.pallas import tpu as pltpu


def _round_up(x, m):
    return ((x + m - 1) // m) * m


# ---------------------------------------------------------------------------
# interpolation matrix + pure-jnp reference helpers (reference path only)
# ---------------------------------------------------------------------------
def _interp_matrix(l_in, t):
    """(T, L_in) matrix implementing F.interpolate(mode='linear', align_corners=True)."""
    if t == 1:
        return jnp.zeros((1, l_in), jnp.float32).at[0, 0].set(1.0)
    pos = jnp.arange(t, dtype=jnp.float32) * ((l_in - 1) / (t - 1))
    i0 = jnp.clip(jnp.floor(pos).astype(jnp.int32), 0, l_in - 1)
    i1 = jnp.minimum(i0 + 1, l_in - 1)
    frac = pos - i0.astype(jnp.float32)
    oh0 = jax.nn.one_hot(i0, l_in, dtype=jnp.float32)
    oh1 = jax.nn.one_hot(i1, l_in, dtype=jnp.float32)
    return (1.0 - frac)[:, None] * oh0 + frac[:, None] * oh1


def _conv1d_k3(x, w):
    """Reference 1-D conv, k=3, stride=1, zero pad=1.  x:(L,Cin)  w:(3,Cin,Cout)."""
    cin = x.shape[1]
    zero = jnp.zeros((1, cin), dtype=x.dtype)
    x_prev = jnp.concatenate([zero, x[:-1]], axis=0)
    x_next = jnp.concatenate([x[1:], zero], axis=0)
    return (jnp.dot(x_prev, w[0], preferred_element_type=jnp.float32)
            + jnp.dot(x, w[1], preferred_element_type=jnp.float32)
            + jnp.dot(x_next, w[2], preferred_element_type=jnp.float32))


def _conv_transpose1d_k4s2(x, w):
    """Reference ConvTranspose1d, k=4, s=2, p=1.  x:(L,Cin) w:(4,Cin,Cout) -> (2L,Cout)."""
    L, cin = x.shape
    cout = w.shape[2]
    zero = jnp.zeros((1, cin), dtype=x.dtype)
    x_prev = jnp.concatenate([zero, x[:-1]], axis=0)
    x_next = jnp.concatenate([x[1:], zero], axis=0)
    y_even = (jnp.dot(x, w[1], preferred_element_type=jnp.float32)
              + jnp.dot(x_prev, w[3], preferred_element_type=jnp.float32))
    y_odd = (jnp.dot(x, w[2], preferred_element_type=jnp.float32)
             + jnp.dot(x_next, w[0], preferred_element_type=jnp.float32))
    return jnp.concatenate([y_even[:, None, :], y_odd[:, None, :]],
                           axis=1).reshape(2 * L, cout)


# ---------------------------------------------------------------------------
# wrapper-side weight packing
#   * transposed convs are expressed as 3-tap convs whose outputs carry their
#     2 (resp. 4) output phases packed on the lane axis.
#   * every conv weight is stored per tap [prev, mid, next] so the kernel does
#     3 small-K matmuls per conv (no im2col concat needed).
# ---------------------------------------------------------------------------
def _pack_params(params):
    w1 = params["w1"]                                   # (3, Cin, H)
    wr1 = params["wr1"]                                 # (NL, 3, H, RH)
    wt1 = params["wt1"]                                 # (4, H, Hh)
    wt2 = params["wt2"]                                 # (4, Hh, 7)
    nl, _, h, rh = wr1.shape
    hh = wt1.shape[2]
    cout = wt2.shape[2]

    # conv_trans_1: taps (l-1, l, l+1) of the input stream -> (even | odd) lanes
    zt1 = jnp.zeros((h, hh), jnp.float32)
    wt1p = jnp.stack([
        jnp.concatenate([wt1[3], zt1], axis=1),         # tap l-1
        jnp.concatenate([wt1[1], wt1[2]], axis=1),      # tap l
        jnp.concatenate([zt1, wt1[0]], axis=1),         # tap l+1
    ], axis=0)                                          # (3, H, 2Hh)

    # conv_trans_2 applied to the (even|odd)-packed stream: 4 output positions
    # per input row, packed on lanes as 4 groups of `cout`.
    z = jnp.zeros((hh, cout), jnp.float32)
    prev = jnp.concatenate([
        jnp.concatenate([z, z, z, z], axis=1),                    # even rows
        jnp.concatenate([wt2[3], z, z, z], axis=1)], axis=0)      # odd rows
    mid = jnp.concatenate([
        jnp.concatenate([wt2[1], wt2[2], wt2[3], z], axis=1),
        jnp.concatenate([z, wt2[0], wt2[1], wt2[2]], axis=1)], axis=0)
    nxt = jnp.concatenate([
        jnp.concatenate([z, z, z, wt2[0]], axis=1),
        jnp.concatenate([z, z, z, z], axis=1)], axis=0)
    wt2p = jnp.stack([prev, mid, nxt], axis=0)          # (3, 2Hh, 4*cout)

    return dict(
        w1=w1,                                          # (3, Cin, H)
        b1=params["b1"],                                # (1, H)
        wr1p=wr1.reshape(nl * 3, h, rh),                # (3NL, H, RH)
        wr2=params["wr2"],                              # (NL, RH, H)
        wt1p=wt1p,                                      # (3, H, 2Hh)
        bt1p=jnp.concatenate([params["bt1"], params["bt1"]], axis=1),  # (1, 2Hh)
        wt2p=wt2p,                                      # (3, 2Hh, 28)
        bt2p=jnp.tile(params["bt2"], (1, 4)),           # (1, 28)
    )


# ---------------------------------------------------------------------------
# Pallas kernel: full Decoder forward for a block of `bb` batch items.
# Rows: per item, rows [0, T) hold data and rows [T, S) are zero pad rows
# (S is a multiple of 8), items stacked back to back -> n = bb*S rows total.
# ---------------------------------------------------------------------------
def _decoder_kernel(mt_ref, mtp_ref, mask_ref, xnc_ref, xlc_ref,
                    w1_ref, b1_ref, wr1_ref, wr2_ref,
                    wt1_ref, bt1_ref, wt2_ref, bt2_ref,
                    out_ref, after_ref, *, bb, nl):
    n = out_ref.shape[0]
    mask = mask_ref[...]                       # (n, 1): 0 on per-item pad rows

    # ---- F.interpolate(linear, align_corners=True) ----
    # `after` slabs in NCL orientation (lane-dense (Cin, T) stores), and the
    # conv seed in (time, channel) orientation.  mtp carries S-T trailing zero
    # rows, so each per-item seed block comes out of the matmul already padded.
    pieces = []
    for b in range(bb):
        after_ref[b] = jnp.dot(xnc_ref[b], mt_ref[...],
                               preferred_element_type=jnp.float32)        # (Cin, T)
        pieces.append(jnp.dot(mtp_ref[...], xlc_ref[b],
                              preferred_element_type=jnp.float32))        # (S, Cin)
    v0 = pieces[0] if bb == 1 else jnp.concatenate(pieces, axis=0)        # (n, Cin)

    def conv3(v, w_prev, w_mid, w_next, bias=None, apply_mask=True):
        """3-tap conv (and packed transposed conv): shifted rows via XLU roll,
        three small-K MXU matmuls accumulated in f32."""
        v_prev = pltpu.roll(v, 1, 0)         # row r <- row r-1 (wraps into a pad row)
        v_next = pltpu.roll(v, n - 1, 0)     # row r <- row r+1
        y = (jnp.dot(v_prev, w_prev, preferred_element_type=jnp.float32)
             + jnp.dot(v, w_mid, preferred_element_type=jnp.float32)
             + jnp.dot(v_next, w_next, preferred_element_type=jnp.float32))
        if bias is not None:
            y = y + bias
        if apply_mask:
            # keep pad rows exactly zero: they feed the next conv's +/-1 taps
            y = y * mask
        return y

    # ---- conv_1: Conv1d(Cin -> H, k=3, p=1) + bias ----
    h = conv3(v0, w1_ref[0], w1_ref[1], w1_ref[2], b1_ref[...])          # (n, H)

    # ---- residual stack ----
    for li in range(nl):
        r = conv3(jnp.maximum(h, 0.0),
                  wr1_ref[3 * li], wr1_ref[3 * li + 1], wr1_ref[3 * li + 2])  # (n, RH)
        r = jnp.maximum(r, 0.0)
        r = jnp.dot(r, wr2_ref[li], preferred_element_type=jnp.float32)  # 1x1 conv
        h = h + r
    h = jnp.maximum(h, 0.0)                                              # stack ReLU

    # ---- conv_trans_1 (H -> H//2, k=4, s=2, p=1) + bias, ReLU ----
    # even/odd output phases packed on lanes: (n, 2*Hh)
    hh = jnp.maximum(
        conv3(h, wt1_ref[0], wt1_ref[1], wt1_ref[2], bt1_ref[...]), 0.0)

    # ---- conv_trans_2 (H//2 -> 7, k=4, s=2, p=1) + bias ----
    # 4 output positions per row packed on lanes: (n, 28); single block store,
    # pad rows are stripped by the wrapper.
    out_ref[...] = conv3(hh, wt2_ref[0], wt2_ref[1], wt2_ref[2], bt2_ref[...],
                         apply_mask=False)


# ---------------------------------------------------------------------------
# wrapper
# ---------------------------------------------------------------------------
@functools.partial(jax.jit, static_argnames=("length", "batch_block"))
def decoder_forward(inputs, params, *, length, batch_block=None):
    """inputs: (B, Cin, L_in) float32 NCL.

    Returns (torch.squeeze(out), after):
      out   : (B, 7, 4*(length//4))   (squeezed like torch.squeeze)
      after : (B, Cin, length//4)
    batch_block: batch items per grid step (default 1 -> grid = B steps, which
    keeps both v7x TensorCores busy and lets v5e/v6e overlap writeback).
    """
    B, Cin, L_in = inputs.shape
    T = length // 4                        # matches torch int(length / 4) for ints
    S = _round_up(T + 1, 8)                # per-item row stride (>=1 zero pad row)
    p = _pack_params(params)
    H = p["w1"].shape[2]
    RH = p["wr1p"].shape[2]
    NL = p["wr2"].shape[0]
    HH2 = p["wt1p"].shape[2]               # 2 * (H // 2)
    C4 = p["wt2p"].shape[2]                # 4 * 7

    bb = 1 if batch_block is None else batch_block
    assert B % bb == 0, "batch_block must divide the batch size"
    G = B // bb
    n = bb * S

    mtT = _interp_matrix(L_in, T)                                   # (T, L_in)
    mt = mtT.T                                                      # (L_in, T)
    mtp = jnp.concatenate(
        [mtT, jnp.zeros((S - T, L_in), jnp.float32)], axis=0)      # (S, L_in)
    mask = ((jnp.arange(n) % S) < T).astype(jnp.float32)[:, None]   # (n, 1)
    x_lc = jnp.transpose(inputs, (0, 2, 1))                         # (B, L_in, Cin)

    # explicit VMEM budget (weights + 2x in/out blocks + live activations)
    f32 = 4
    weight_bytes = f32 * (3 * Cin * H + H + 3 * NL * H * RH + NL * RH * H
                          + 3 * H * HH2 + HH2 + 3 * HH2 * C4 + C4
                          + L_in * T + S * L_in + n)
    io_bytes = f32 * (2 * bb * Cin * L_in + n * C4 + bb * Cin * T)
    act_bytes = f32 * n * (Cin + 4 * H + 3 * HH2 + 2 * C4)
    vmem_limit = int(min(max(2 * (weight_bytes + io_bytes) + act_bytes + (4 << 20),
                             32 << 20), 64 << 20))

    kernel = functools.partial(_decoder_kernel, bb=bb, nl=NL)

    out_p, after = pl.pallas_call(
        kernel,
        grid=(G,),
        in_specs=[
            pl.BlockSpec((L_in, T), lambda i: (0, 0)),              # interp^T (for `after`)
            pl.BlockSpec((S, L_in), lambda i: (0, 0)),              # interp, zero-pad rows
            pl.BlockSpec((n, 1), lambda i: (0, 0)),                 # pad-row mask
            pl.BlockSpec((bb, Cin, L_in), lambda i: (i, 0, 0)),     # inputs (NCL)
            pl.BlockSpec((bb, L_in, Cin), lambda i: (i, 0, 0)),     # inputs (NLC)
            pl.BlockSpec((3, Cin, H), lambda i: (0, 0, 0)),         # conv_1 taps
            pl.BlockSpec((1, H), lambda i: (0, 0)),
            pl.BlockSpec((3 * NL, H, RH), lambda i: (0, 0, 0)),     # residual k=3 taps
            pl.BlockSpec((NL, RH, H), lambda i: (0, 0, 0)),         # residual 1x1
            pl.BlockSpec((3, H, HH2), lambda i: (0, 0, 0)),         # conv_trans_1 taps
            pl.BlockSpec((1, HH2), lambda i: (0, 0)),
            pl.BlockSpec((3, HH2, C4), lambda i: (0, 0, 0)),        # conv_trans_2 taps
            pl.BlockSpec((1, C4), lambda i: (0, 0)),
        ],
        out_specs=(
            pl.BlockSpec((n, C4), lambda i: (i, 0)),                # halo-padded output
            pl.BlockSpec((bb, Cin, T), lambda i: (i, 0, 0)),        # `after`, NCL
        ),
        out_shape=(
            jax.ShapeDtypeStruct((B * S, C4), jnp.float32),
            jax.ShapeDtypeStruct((B, Cin, T), jnp.float32),
        ),
        compiler_params=pltpu.CompilerParams(
            dimension_semantics=("parallel",),
            vmem_limit_bytes=vmem_limit),
    )(mt, mtp, mask, inputs, x_lc,
      p["w1"], p["b1"], p["wr1p"], p["wr2"],
      p["wt1p"], p["bt1p"], p["wt2p"], p["bt2p"])

    # strip per-item pad rows and unpack the 4 lane-packed output phases,
    # then go to NCL; torch.squeeze drops all 1-dims.
    out = out_p.reshape(B, S, 4, 7)[:, :T].reshape(B, 4 * T, 7)
    out = jnp.transpose(out, (0, 2, 1))
    return jnp.squeeze(out), after


# ---------------------------------------------------------------------------
# pure-JAX reference (independent, un-fused math) -- sanity check only
# ---------------------------------------------------------------------------
def decoder_reference(inputs, length, params):
    B, Cin, L_in = inputs.shape
    T = length // 4
    NL = params["wr1"].shape[0]
    M = _interp_matrix(L_in, T)
    outs, afters = [], []
    for b in range(B):
        x = inputs[b].T                                # (L_in, Cin)
        xi = M @ x
        afters.append(xi)
        h = _conv1d_k3(xi, params["w1"]) + params["b1"]
        for li in range(NL):
            r = jnp.maximum(h, 0.0)
            r = _conv1d_k3(r, params["wr1"][li])
            r = jnp.maximum(r, 0.0)
            r = r @ params["wr2"][li]
            h = h + r
        h = jnp.maximum(h, 0.0)
        h = _conv_transpose1d_k4s2(h, params["wt1"]) + params["bt1"]
        h = jnp.maximum(h, 0.0)
        y = _conv_transpose1d_k4s2(h, params["wt2"]) + params["bt2"]
        outs.append(y)
    out = jnp.stack(outs).transpose(0, 2, 1)
    after = jnp.stack(afters).transpose(0, 2, 1)
    return jnp.squeeze(out), after


def init_params(key, in_channels, num_hiddens, num_residual_layers,
                num_residual_hiddens):
    """Deterministic synthetic weights laid out as (tap, Cin, Cout)."""
    H, RH = num_hiddens, num_residual_hiddens
    Hh = H // 2
    ks = jax.random.split(key, 8)
    s = 0.1
    return dict(
        w1=s * jax.random.normal(ks[0], (3, in_channels, H), jnp.float32),
        b1=s * jax.random.normal(ks[1], (1, H), jnp.float32),
        wr1=s * jax.random.normal(ks[2], (num_residual_layers, 3, H, RH), jnp.float32),
        wr2=s * jax.random.normal(ks[3], (num_residual_layers, RH, H), jnp.float32),
        wt1=s * jax.random.normal(ks[4], (4, H, Hh), jnp.float32),
        bt1=s * jax.random.normal(ks[5], (1, Hh), jnp.float32),
        wt2=s * jax.random.normal(ks[6], (4, Hh, 7), jnp.float32),
        bt2=s * jax.random.normal(ks[7], (1, 7), jnp.float32),
    )


if __name__ == "__main__":
    key = jax.random.PRNGKey(0)
    k_in, k_par = jax.random.split(key)

    # small shapes: B=2, in_channels=4, input length 8, target length 64 (T=16)
    B, Cin, L_in = 2, 4, 8
    num_hiddens, num_residual_layers, num_residual_hiddens = 32, 2, 8
    length = 64

    inputs = jax.random.normal(k_in, (B, Cin, L_in), jnp.float32)
    params = init_params(k_par, Cin, num_hiddens, num_residual_layers,
                         num_residual_hiddens)

    # default: one item per grid step (multi-step pipelined grid)
    out, after = decoder_forward(inputs, params, length=length)
    # batch-stacked variant: both items folded into a single grid step
    out2, after2 = decoder_forward(inputs, params, length=length, batch_block=2)
    jax.block_until_ready((out, after, out2, after2))

    ref_out, ref_after = decoder_reference(inputs, length, params)

    assert out.shape == (B, 7, length), out.shape
    assert after.shape == (B, Cin, length // 4), after.shape
    assert bool(jnp.all(jnp.isfinite(out)))
    assert jnp.allclose(out, ref_out, atol=1e-4, rtol=1e-4), \
        float(jnp.max(jnp.abs(out - ref_out)))
    assert jnp.allclose(after, ref_after, atol=1e-5, rtol=1e-5)
    assert jnp.allclose(out2, ref_out, atol=1e-4, rtol=1e-4)
    assert jnp.allclose(after2, ref_after, atol=1e-5, rtol=1e-5)
    print("KERNEL_OK")
</pallas_src>

<mosaic_0001>
module attributes {stable_mosaic.version = 11 : i64} {
  func.func @_decoder_kernel(%arg0: i32, %arg1: memref<8x16xf32, #tpu.memory_space<vmem>>, %arg2: memref<24x8xf32, #tpu.memory_space<vmem>>, %arg3: memref<24x1xf32, #tpu.memory_space<vmem>>, %arg4: memref<1x4x8xf32, #tpu.memory_space<vmem>>, %arg5: memref<1x8x4xf32, #tpu.memory_space<vmem>>, %arg6: memref<3x4x32xf32, #tpu.memory_space<vmem>>, %arg7: memref<1x32xf32, #tpu.memory_space<vmem>>, %arg8: memref<6x32x8xf32, #tpu.memory_space<vmem>>, %arg9: memref<2x8x32xf32, #tpu.memory_space<vmem>>, %arg10: memref<3x32x32xf32, #tpu.memory_space<vmem>>, %arg11: memref<1x32xf32, #tpu.memory_space<vmem>>, %arg12: memref<3x32x28xf32, #tpu.memory_space<vmem>>, %arg13: memref<1x28xf32, #tpu.memory_space<vmem>>, %arg14: memref<24x28xf32, #tpu.memory_space<vmem>>, %arg15: memref<1x4x16xf32, #tpu.memory_space<vmem>>) attributes {dimension_semantics = [#tpu.dimension_semantics<parallel>], iteration_bounds = array<i64: 2>, scalar_prefetch = 0 : i64, scratch_operands = 0 : i64, tpu.core_type = #tpu.core_type<tc>, window_params = [{pipeline_mode = #tpu.pipeline_mode<synchronous>, transform_indices = @transform_0, window_bounds = array<i64: 8, 16>}, {pipeline_mode = #tpu.pipeline_mode<synchronous>, transform_indices = @transform_1, window_bounds = array<i64: 24, 8>}, {pipeline_mode = #tpu.pipeline_mode<synchronous>, transform_indices = @transform_2, window_bounds = array<i64: 24, 1>}, {transform_indices = @transform_3, window_bounds = array<i64: 1, 4, 8>}, {transform_indices = @transform_4, window_bounds = array<i64: 1, 8, 4>}, {pipeline_mode = #tpu.pipeline_mode<synchronous>, transform_indices = @transform_5, window_bounds = array<i64: 3, 4, 32>}, {pipeline_mode = #tpu.pipeline_mode<synchronous>, transform_indices = @transform_6, window_bounds = array<i64: 1, 32>}, {pipeline_mode = #tpu.pipeline_mode<synchronous>, transform_indices = @transform_7, window_bounds = array<i64: 6, 32, 8>}, {pipeline_mode = #tpu.pipeline_mode<synchronous>, transform_indices = @transform_8, window_bounds = array<i64: 2, 8, 32>}, {pipeline_mode = #tpu.pipeline_mode<synchronous>, transform_indices = @transform_9, window_bounds = array<i64: 3, 32, 32>}, {pipeline_mode = #tpu.pipeline_mode<synchronous>, transform_indices = @transform_10, window_bounds = array<i64: 1, 32>}, {pipeline_mode = #tpu.pipeline_mode<synchronous>, transform_indices = @transform_11, window_bounds = array<i64: 3, 32, 28>}, {pipeline_mode = #tpu.pipeline_mode<synchronous>, transform_indices = @transform_12, window_bounds = array<i64: 1, 28>}, {transform_indices = @transform_13, window_bounds = array<i64: 24, 28>}, {transform_indices = @transform_14, window_bounds = array<i64: 1, 4, 16>}]} {
    %c0 = arith.constant 0 : index
    %c0_0 = arith.constant 0 : index
    %0 = vector.load %arg3[%c0, %c0_0] : memref<24x1xf32, #tpu.memory_space<vmem>>, vector<24x1xf32>
    %c0_1 = arith.constant 0 : index
    %c0_2 = arith.constant 0 : index
    %c0_3 = arith.constant 0 : index
    %1 = vector.load %arg4[%c0_1, %c0_2, %c0_3] : memref<1x4x8xf32, #tpu.memory_space<vmem>>, vector<1x4x8xf32>
    %2 = vector.shape_cast %1 : vector<1x4x8xf32> to vector<4x8xf32>
    %c0_4 = arith.constant 0 : index
    %c0_5 = arith.constant 0 : index
    %3 = vector.load %arg1[%c0_4, %c0_5] : memref<8x16xf32, #tpu.memory_space<vmem>>, vector<8x16xf32>
    %cst = arith.constant dense<0.000000e+00> : vector<4x16xf32>
    %4 = tpu.matmul %2, %3, %cst {dimension_numbers = #tpu.dot_dimension_numbers<[1], [0], [0], [1], [0, 0, 1, 1], [], []>} : vector<4x8xf32>, vector<8x16xf32>, vector<4x16xf32> -> vector<4x16xf32>
    %c0_6 = arith.constant 0 : index
    %c0_7 = arith.constant 0 : index
    %c0_8 = arith.constant 0 : index
    %5 = vector.load %arg15[%c0_6, %c0_7, %c0_8] : memref<1x4x16xf32, #tpu.memory_space<vmem>>, vector<1x4x16xf32>
    %6 = vector.shape_cast %5 : vector<1x4x16xf32> to vector<4x16xf32>
    %7 = vector.shape_cast %4 : vector<4x16xf32> to vector<1x4x16xf32>
    tpu.vector_store %arg15[%c0_6, %c0_7, %c0_8], %7 {strides = array<i32>} : memref<1x4x16xf32, #tpu.memory_space<vmem>>, vector<1x4x16xf32>,
    %c0_9 = arith.constant 0 : index
    %c0_10 = arith.constant 0 : index
    %8 = vector.load %arg2[%c0_9, %c0_10] : memref<24x8xf32, #tpu.memory_space<vmem>>, vector<24x8xf32>
    %c0_11 = arith.constant 0 : index
    %c0_12 = arith.constant 0 : index
    %c0_13 = arith.constant 0 : index
    %9 = vector.load %arg5[%c0_11, %c0_12, %c0_13] : memref<1x8x4xf32, #tpu.memory_space<vmem>>, vector<1x8x4xf32>
    %10 = vector.shape_cast %9 : vector<1x8x4xf32> to vector<8x4xf32>
    %cst_14 = arith.constant dense<0.000000e+00> : vector<24x4xf32>
    %11 = tpu.matmul %8, %10, %cst_14 {dimension_numbers = #tpu.dot_dimension_numbers<[1], [0], [0], [1], [0, 0, 1, 1], [], []>} : vector<24x8xf32>, vector<8x4xf32>, vector<24x4xf32> -> vector<24x4xf32>
    %c0_15 = arith.constant 0 : index
    %c0_16 = arith.constant 0 : index
    %c0_17 = arith.constant 0 : index
    %12 = vector.load %arg6[%c0_15, %c0_16, %c0_17] : memref<3x4x32xf32, #tpu.memory_space<vmem>>, vector<1x4x32xf32>
    %13 = vector.shape_cast %12 : vector<1x4x32xf32> to vector<4x32xf32>
    %c1 = arith.constant 1 : index
    %c0_18 = arith.constant 0 : index
    %c0_19 = arith.constant 0 : index
    %14 = vector.load %arg6[%c1, %c0_18, %c0_19] : memref<3x4x32xf32, #tpu.memory_space<vmem>>, vector<1x4x32xf32>
    %15 = vector.shape_cast %14 : vector<1x4x32xf32> to vector<4x32xf32>
    %c2 = arith.constant 2 : index
    %c0_20 = arith.constant 0 : index
    %c0_21 = arith.constant 0 : index
    %16 = vector.load %arg6[%c2, %c0_20, %c0_21] : memref<3x4x32xf32, #tpu.memory_space<vmem>>, vector<1x4x32xf32>
    %17 = vector.shape_cast %16 : vector<1x4x32xf32> to vector<4x32xf32>
    %c0_22 = arith.constant 0 : index
    %c0_23 = arith.constant 0 : index
    %18 = vector.load %arg7[%c0_22, %c0_23] : memref<1x32xf32, #tpu.memory_space<vmem>>, vector<1x32xf32>
    %c1_i32 = arith.constant 1 : i32
    %19 = tpu.dynamic_rotate %11 by %c1_i32 dim 0 : vector<24x4xf32>, i32 -> vector<24x4xf32>
    %c23_i32 = arith.constant 23 : i32
    %20 = tpu.dynamic_rotate %11 by %c23_i32 dim 0 : vector<24x4xf32>, i32 -> vector<24x4xf32>
    %cst_24 = arith.constant dense<0.000000e+00> : vector<24x32xf32>
    %21 = tpu.matmul %19, %13, %cst_24 {dimension_numbers = #tpu.dot_dimension_numbers<[1], [0], [0], [1], [0, 0, 1, 1], [], []>} : vector<24x4xf32>, vector<4x32xf32>, vector<24x32xf32> -> vector<24x32xf32>
    %cst_25 = arith.constant dense<0.000000e+00> : vector<24x32xf32>
    %22 = tpu.matmul %11, %15, %cst_25 {dimension_numbers = #tpu.dot_dimension_numbers<[1], [0], [0], [1], [0, 0, 1, 1], [], []>} : vector<24x4xf32>, vector<4x32xf32>, vector<24x32xf32> -> vector<24x32xf32>
    %23 = arith.addf %21, %22 : vector<24x32xf32>
    %cst_26 = arith.constant dense<0.000000e+00> : vector<24x32xf32>
    %24 = tpu.matmul %20, %17, %cst_26 {dimension_numbers = #tpu.dot_dimension_numbers<[1], [0], [0], [1], [0, 0, 1, 1], [], []>} : vector<24x4xf32>, vector<4x32xf32>, vector<24x32xf32> -> vector<24x32xf32>
    %25 = arith.addf %23, %24 : vector<24x32xf32>
    %26 = vector.broadcast %18 : vector<1x32xf32> to vector<24x32xf32>
    %27 = arith.addf %25, %26 : vector<24x32xf32>
    %28 = vector.broadcast %0 : vector<24x1xf32> to vector<24x32xf32>
    %29 = arith.mulf %27, %28 : vector<24x32xf32>
    %cst_27 = arith.constant 0.000000e+00 : f32
    %30 = vector.broadcast %cst_27 : f32 to vector<24x32xf32>
    %31 = arith.maximumf %29, %30 : vector<24x32xf32>
    %c0_28 = arith.constant 0 : index
    %c0_29 = arith.constant 0 : index
    %c0_30 = arith.constant 0 : index
    %32 = vector.load %arg8[%c0_28, %c0_29, %c0_30] : memref<6x32x8xf32, #tpu.memory_space<vmem>>, vector<1x32x8xf32>
    %33 = vector.shape_cast %32 : vector<1x32x8xf32> to vector<32x8xf32>
    %c1_31 = arith.constant 1 : index
    %c0_32 = arith.constant 0 : index
    %c0_33 = arith.constant 0 : index
    %34 = vector.load %arg8[%c1_31, %c0_32, %c0_33] : memref<6x32x8xf32, #tpu.memory_space<vmem>>, vector<1x32x8xf32>
    %35 = vector.shape_cast %34 : vector<1x32x8xf32> to vector<32x8xf32>
    %c2_34 = arith.constant 2 : index
    %c0_35 = arith.constant 0 : index
    %c0_36 = arith.constant 0 : index
    %36 = vector.load %arg8[%c2_34, %c0_35, %c0_36] : memref<6x32x8xf32, #tpu.memory_space<vmem>>, vector<1x32x8xf32>
    %37 = vector.shape_cast %36 : vector<1x32x8xf32> to vector<32x8xf32>
    %c1_i32_37 = arith.constant 1 : i32
    %38 = tpu.dynamic_rotate %31 by %c1_i32_37 dim 0 : vector<24x32xf32>, i32 -> vector<24x32xf32>
    %c23_i32_38 = arith.constant 23 : i32
    %39 = tpu.dynamic_rotate %31 by %c23_i32_38 dim 0 : vector<24x32xf32>, i32 -> vector<24x32xf32>
    %cst_39 = arith.constant dense<0.000000e+00> : vector<24x8xf32>
    %40 = tpu.matmul %38, %33, %cst_39 {dimension_numbers = #tpu.dot_dimension_numbers<[1], [0], [0], [1], [0, 0, 1, 1], [], []>} : vector<24x32xf32>, vector<32x8xf32>, vector<24x8xf32> -> vector<24x8xf32>
    %cst_40 = arith.constant dense<0.000000e+00> : vector<24x8xf32>
    %41 = tpu.matmul %31, %35, %cst_40 {dimension_numbers = #tpu.dot_dimension_numbers<[1], [0], [0], [1], [0, 0, 1, 1], [], []>} : vector<24x32xf32>, vector<32x8xf32>, vector<24x8xf32> -> vector<24x8xf32>
    %42 = arith.addf %40, %41 : vector<24x8xf32>
    %cst_41 = arith.constant dense<0.000000e+00> : vector<24x8xf32>
    %43 = tpu.matmul %39, %37, %cst_41 {dimension_numbers = #tpu.dot_dimension_numbers<[1], [0], [0], [1], [0, 0, 1, 1], [], []>} : vector<24x32xf32>, vector<32x8xf32>, vector<24x8xf32> -> vector<24x8xf32>
    %44 = arith.addf %42, %43 : vector<24x8xf32>
    %45 = vector.broadcast %0 : vector<24x1xf32> to vector<24x8xf32>
    %46 = arith.mulf %44, %45 : vector<24x8xf32>
    %cst_42 = arith.constant 0.000000e+00 : f32
    %47 = vector.broadcast %cst_42 : f32 to vector<24x8xf32>
    %48 = arith.maximumf %46, %47 : vector<24x8xf32>
    %c0_43 = arith.constant 0 : index
    %c0_44 = arith.constant 0 : index
    %c0_45 = arith.constant 0 : index
    %49 = vector.load %arg9[%c0_43, %c0_44, %c0_45] : memref<2x8x32xf32, #tpu.memory_space<vmem>>, vector<1x8x32xf32>
    %50 = vector.shape_cast %49 : vector<1x8x32xf32> to vector<8x32xf32>
    %cst_46 = arith.constant dense<0.000000e+00> : vector<24x32xf32>
    %51 = tpu.matmul %48, %50, %cst_46 {dimension_numbers = #tpu.dot_dimension_numbers<[1], [0], [0], [1], [0, 0, 1, 1], [], []>} : vector<24x8xf32>, vector<8x32xf32>, vector<24x32xf32> -> vector<24x32xf32>
    %52 = arith.addf %29, %51 : vector<24x32xf32>
    %cst_47 = arith.constant 0.000000e+00 : f32
    %53 = vector.broadcast %cst_47 : f32 to vector<24x32xf32>
    %54 = arith.maximumf %52, %53 : vector<24x32xf32>
    %c3 = arith.constant 3 : index
    %c0_48 = arith.constant 0 : index
    %c0_49 = arith.constant 0 : index
    %55 = vector.load %arg8[%c3, %c0_48, %c0_49] : memref<6x32x8xf32, #tpu.memory_space<vmem>>, vector<1x32x8xf32>
    %56 = vector.shape_cast %55 : vector<1x32x8xf32> to vector<32x8xf32>
    %c4 = arith.constant 4 : index
    %c0_50 = arith.constant 0 : index
    %c0_51 = arith.constant 0 : index
    %57 = vector.load %arg8[%c4, %c0_50, %c0_51] : memref<6x32x8xf32, #tpu.memory_space<vmem>>, vector<1x32x8xf32>
    %58 = vector.shape_cast %57 : vector<1x32x8xf32> to vector<32x8xf32>
    %c5 = arith.constant 5 : index
    %c0_52 = arith.constant 0 : index
    %c0_53 = arith.constant 0 : index
    %59 = vector.load %arg8[%c5, %c0_52, %c0_53] : memref<6x32x8xf32, #tpu.memory_space<vmem>>, vector<1x32x8xf32>
    %60 = vector.shape_cast %59 : vector<1x32x8xf32> to vector<32x8xf32>
    %c1_i32_54 = arith.constant 1 : i32
    %61 = tpu.dynamic_rotate %54 by %c1_i32_54 dim 0 : vector<24x32xf32>, i32 -> vector<24x32xf32>
    %c23_i32_55 = arith.constant 23 : i32
    %62 = tpu.dynamic_rotate %54 by %c23_i32_55 dim 0 : vector<24x32xf32>, i32 -> vector<24x32xf32>
    %cst_56 = arith.constant dense<0.000000e+00> : vector<24x8xf32>
    %63 = tpu.matmul %61, %56, %cst_56 {dimension_numbers = #tpu.dot_dimension_numbers<[1], [0], [0], [1], [0, 0, 1, 1], [], []>} : vector<24x32xf32>, vector<32x8xf32>, vector<24x8xf32> -> vector<24x8xf32>
    %cst_57 = arith.constant dense<0.000000e+00> : vector<24x8xf32>
    %64 = tpu.matmul %54, %58, %cst_57 {dimension_numbers = #tpu.dot_dimension_numbers<[1], [0], [0], [1], [0, 0, 1, 1], [], []>} : vector<24x32xf32>, vector<32x8xf32>, vector<24x8xf32> -> vector<24x8xf32>
    %65 = arith.addf %63, %64 : vector<24x8xf32>
    %cst_58 = arith.constant dense<0.000000e+00> : vector<24x8xf32>
    %66 = tpu.matmul %62, %60, %cst_58 {dimension_numbers = #tpu.dot_dimension_numbers<[1], [0], [0], [1], [0, 0, 1, 1], [], []>} : vector<24x32xf32>, vector<32x8xf32>, vector<24x8xf32> -> vector<24x8xf32>
    %67 = arith.addf %65, %66 : vector<24x8xf32>
    %68 = vector.broadcast %0 : vector<24x1xf32> to vector<24x8xf32>
    %69 = arith.mulf %67, %68 : vector<24x8xf32>
    %cst_59 = arith.constant 0.000000e+00 : f32
    %70 = vector.broadcast %cst_59 : f32 to vector<24x8xf32>
    %71 = arith.maximumf %69, %70 : vector<24x8xf32>
    %c1_60 = arith.constant 1 : index
    %c0_61 = arith.constant 0 : index
    %c0_62 = arith.constant 0 : index
    %72 = vector.load %arg9[%c1_60, %c0_61, %c0_62] : memref<2x8x32xf32, #tpu.memory_space<vmem>>, vector<1x8x32xf32>
    %73 = vector.shape_cast %72 : vector<1x8x32xf32> to vector<8x32xf32>
    %cst_63 = arith.constant dense<0.000000e+00> : vector<24x32xf32>
    %74 = tpu.matmul %71, %73, %cst_63 {dimension_numbers = #tpu.dot_dimension_numbers<[1], [0], [0], [1], [0, 0, 1, 1], [], []>} : vector<24x8xf32>, vector<8x32xf32>, vector<24x32xf32> -> vector<24x32xf32>
    %75 = arith.addf %52, %74 : vector<24x32xf32>
    %cst_64 = arith.constant 0.000000e+00 : f32
    %76 = vector.broadcast %cst_64 : f32 to vector<24x32xf32>
    %77 = arith.maximumf %75, %76 : vector<24x32xf32>
    %c0_65 = arith.constant 0 : index
    %c0_66 = arith.constant 0 : index
    %c0_67 = arith.constant 0 : index
    %78 = vector.load %arg10[%c0_65, %c0_66, %c0_67] : memref<3x32x32xf32, #tpu.memory_space<vmem>>, vector<1x32x32xf32>
    %79 = vector.shape_cast %78 : vector<1x32x32xf32> to vector<32x32xf32>
    %c1_68 = arith.constant 1 : index
    %c0_69 = arith.constant 0 : index
    %c0_70 = arith.constant 0 : index
    %80 = vector.load %arg10[%c1_68, %c0_69, %c0_70] : memref<3x32x32xf32, #tpu.memory_space<vmem>>, vector<1x32x32xf32>
    %81 = vector.shape_cast %80 : vector<1x32x32xf32> to vector<32x32xf32>
    %c2_71 = arith.constant 2 : index
    %c0_72 = arith.constant 0 : index
    %c0_73 = arith.constant 0 : index
    %82 = vector.load %arg10[%c2_71, %c0_72, %c0_73] : memref<3x32x32xf32, #tpu.memory_space<vmem>>, vector<1x32x32xf32>
    %83 = vector.shape_cast %82 : vector<1x32x32xf32> to vector<32x32xf32>
    %c0_74 = arith.constant 0 : index
    %c0_75 = arith.constant 0 : index
    %84 = vector.load %arg11[%c0_74, %c0_75] : memref<1x32xf32, #tpu.memory_space<vmem>>, vector<1x32xf32>
    %c1_i32_76 = arith.constant 1 : i32
    %85 = tpu.dynamic_rotate %77 by %c1_i32_76 dim 0 : vector<24x32xf32>, i32 -> vector<24x32xf32>
    %c23_i32_77 = arith.constant 23 : i32
    %86 = tpu.dynamic_rotate %77 by %c23_i32_77 dim 0 : vector<24x32xf32>, i32 -> vector<24x32xf32>
    %cst_78 = arith.constant dense<0.000000e+00> : vector<24x32xf32>
    %87 = tpu.matmul %85, %79, %cst_78 {dimension_numbers = #tpu.dot_dimension_numbers<[1], [0], [0], [1], [0, 0, 1, 1], [], []>} : vector<24x32xf32>, vector<32x32xf32>, vector<24x32xf32> -> vector<24x32xf32>
    %cst_79 = arith.constant dense<0.000000e+00> : vector<24x32xf32>
    %88 = tpu.matmul %77, %81, %cst_79 {dimension_numbers = #tpu.dot_dimension_numbers<[1], [0], [0], [1], [0, 0, 1, 1], [], []>} : vector<24x32xf32>, vector<32x32xf32>, vector<24x32xf32> -> vector<24x32xf32>
    %89 = arith.addf %87, %88 : vector<24x32xf32>
    %cst_80 = arith.constant dense<0.000000e+00> : vector<24x32xf32>
    %90 = tpu.matmul %86, %83, %cst_80 {dimension_numbers = #tpu.dot_dimension_numbers<[1], [0], [0], [1], [0, 0, 1, 1], [], []>} : vector<24x32xf32>, vector<32x32xf32>, vector<24x32xf32> -> vector<24x32xf32>
    %91 = arith.addf %89, %90 : vector<24x32xf32>
    %92 = vector.broadcast %84 : vector<1x32xf32> to vector<24x32xf32>
    %93 = arith.addf %91, %92 : vector<24x32xf32>
    %94 = vector.broadcast %0 : vector<24x1xf32> to vector<24x32xf32>
    %95 = arith.mulf %93, %94 : vector<24x32xf32>
    %cst_81 = arith.constant 0.000000e+00 : f32
    %96 = vector.broadcast %cst_81 : f32 to vector<24x32xf32>
    %97 = arith.maximumf %95, %96 : vector<24x32xf32>
    %c0_82 = arith.constant 0 : index
    %c0_83 = arith.constant 0 : index
    %c0_84 = arith.constant 0 : index
    %98 = vector.load %arg12[%c0_82, %c0_83, %c0_84] : memref<3x32x28xf32, #tpu.memory_space<vmem>>, vector<1x32x28xf32>
    %99 = vector.shape_cast %98 : vector<1x32x28xf32> to vector<32x28xf32>
    %c1_85 = arith.constant 1 : index
    %c0_86 = arith.constant 0 : index
    %c0_87 = arith.constant 0 : index
    %100 = vector.load %arg12[%c1_85, %c0_86, %c0_87] : memref<3x32x28xf32, #tpu.memory_space<vmem>>, vector<1x32x28xf32>
    %101 = vector.shape_cast %100 : vector<1x32x28xf32> to vector<32x28xf32>
    %c2_88 = arith.constant 2 : index
    %c0_89 = arith.constant 0 : index
    %c0_90 = arith.constant 0 : index
    %102 = vector.load %arg12[%c2_88, %c0_89, %c0_90] : memref<3x32x28xf32, #tpu.memory_space<vmem>>, vector<1x32x28xf32>
    %103 = vector.shape_cast %102 : vector<1x32x28xf32> to vector<32x28xf32>
    %c0_91 = arith.constant 0 : index
    %c0_92 = arith.constant 0 : index
    %104 = vector.load %arg13[%c0_91, %c0_92] : memref<1x28xf32, #tpu.memory_space<vmem>>, vector<1x28xf32>
    %c1_i32_93 = arith.constant 1 : i32
    %105 = tpu.dynamic_rotate %97 by %c1_i32_93 dim 0 : vector<24x32xf32>, i32 -> vector<24x32xf32>
    %c23_i32_94 = arith.constant 23 : i32
    %106 = tpu.dynamic_rotate %97 by %c23_i32_94 dim 0 : vector<24x32xf32>, i32 -> vector<24x32xf32>
    %cst_95 = arith.constant dense<0.000000e+00> : vector<24x28xf32>
    %107 = tpu.matmul %105, %99, %cst_95 {dimension_numbers = #tpu.dot_dimension_numbers<[1], [0], [0], [1], [0, 0, 1, 1], [], []>} : vector<24x32xf32>, vector<32x28xf32>, vector<24x28xf32> -> vector<24x28xf32>
    %cst_96 = arith.constant dense<0.000000e+00> : vector<24x28xf32>
    %108 = tpu.matmul %97, %101, %cst_96 {dimension_numbers = #tpu.dot_dimension_numbers<[1], [0], [0], [1], [0, 0, 1, 1], [], []>} : vector<24x32xf32>, vector<32x28xf32>, vector<24x28xf32> -> vector<24x28xf32>
    %109 = arith.addf %107, %108 : vector<24x28xf32>
    %cst_97 = arith.constant dense<0.000000e+00> : vector<24x28xf32>
    %110 = tpu.matmul %106, %103, %cst_97 {dimension_numbers = #tpu.dot_dimension_numbers<[1], [0], [0], [1], [0, 0, 1, 1], [], []>} : vector<24x32xf32>, vector<32x28xf32>, vector<24x28xf32> -> vector<24x28xf32>
    %111 = arith.addf %109, %110 : vector<24x28xf32>
    %112 = vector.broadcast %104 : vector<1x28xf32> to vector<24x28xf32>
    %113 = arith.addf %111, %112 : vector<24x28xf32>
    %c0_98 = arith.constant 0 : index
    %c0_99 = arith.constant 0 : index
    %114 = vector.load %arg14[%c0_98, %c0_99] : memref<24x28xf32, #tpu.memory_space<vmem>>, vector<24x28xf32>
    tpu.vector_store %arg14[%c0_98, %c0_99], %113 {strides = array<i32>} : memref<24x28xf32, #tpu.memory_space<vmem>>, vector<24x28xf32>,
    return
  }
  func.func @transform_0(%arg0: i32) -> (i32, i32) {
    %c0_i32 = arith.constant 0 : i32
    %c0_i32_0 = arith.constant 0 : i32
    %c0_i32_1 = arith.constant 0 : i32
    return %c0_i32, %c0_i32_0 : i32, i32
  }
  func.func @transform_1(%arg0: i32) -> (i32, i32) {
    %c0_i32 = arith.constant 0 : i32
    %c0_i32_0 = arith.constant 0 : i32
    %c0_i32_1 = arith.constant 0 : i32
    return %c0_i32, %c0_i32_0 : i32, i32
  }
  func.func @transform_2(%arg0: i32) -> (i32, i32) {
    %c0_i32 = arith.constant 0 : i32
    %c0_i32_0 = arith.constant 0 : i32
    %c0_i32_1 = arith.constant 0 : i32
    return %c0_i32, %c0_i32_0 : i32, i32
  }
  func.func @transform_3(%arg0: i32) -> (i32, i32, i32) {
    %c0_i32 = arith.constant 0 : i32
    %c0_i32_0 = arith.constant 0 : i32
    %c0_i32_1 = arith.constant 0 : i32
    return %arg0, %c0_i32, %c0_i32_0 : i32, i32, i32
  }
  func.func @transform_4(%arg0: i32) -> (i32, i32, i32) {
    %c0_i32 = arith.constant 0 : i32
    %c0_i32_0 = arith.constant 0 : i32
    %c0_i32_1 = arith.constant 0 : i32
    return %arg0, %c0_i32, %c0_i32_0 : i32, i32, i32
  }
  func.func @transform_5(%arg0: i32) -> (i32, i32, i32) {
    %c0_i32 = arith.constant 0 : i32
    %c0_i32_0 = arith.constant 0 : i32
    %c0_i32_1 = arith.constant 0 : i32
    %c0_i32_2 = arith.constant 0 : i32
    return %c0_i32, %c0_i32_0, %c0_i32_1 : i32, i32, i32
  }
  func.func @transform_6(%arg0: i32) -> (i32, i32) {
    %c0_i32 = arith.constant 0 : i32
    %c0_i32_0 = arith.constant 0 : i32
    %c0_i32_1 = arith.constant 0 : i32
    return %c0_i32, %c0_i32_0 : i32, i32
  }
  func.func @transform_7(%arg0: i32) -> (i32, i32, i32) {
    %c0_i32 = arith.constant 0 : i32
    %c0_i32_0 = arith.constant 0 : i32
    %c0_i32_1 = arith.constant 0 : i32
    %c0_i32_2 = arith.constant 0 : i32
    return %c0_i32, %c0_i32_0, %c0_i32_1 : i32, i32, i32
  }
  func.func @transform_8(%arg0: i32) -> (i32, i32, i32) {
    %c0_i32 = arith.constant 0 : i32
    %c0_i32_0 = arith.constant 0 : i32
    %c0_i32_1 = arith.constant 0 : i32
    %c0_i32_2 = arith.constant 0 : i32
    return %c0_i32, %c0_i32_0, %c0_i32_1 : i32, i32, i32
  }
  func.func @transform_9(%arg0: i32) -> (i32, i32, i32) {
    %c0_i32 = arith.constant 0 : i32
    %c0_i32_0 = arith.constant 0 : i32
    %c0_i32_1 = arith.constant 0 : i32
    %c0_i32_2 = arith.constant 0 : i32
    return %c0_i32, %c0_i32_0, %c0_i32_1 : i32, i32, i32
  }
  func.func @transform_10(%arg0: i32) -> (i32, i32) {
    %c0_i32 = arith.constant 0 : i32
    %c0_i32_0 = arith.constant 0 : i32
    %c0_i32_1 = arith.constant 0 : i32
    return %c0_i32, %c0_i32_0 : i32, i32
  }
  func.func @transform_11(%arg0: i32) -> (i32, i32, i32) {
    %c0_i32 = arith.constant 0 : i32
    %c0_i32_0 = arith.constant 0 : i32
    %c0_i32_1 = arith.constant 0 : i32
    %c0_i32_2 = arith.constant 0 : i32
    return %c0_i32, %c0_i32_0, %c0_i32_1 : i32, i32, i32
  }
  func.func @transform_12(%arg0: i32) -> (i32, i32) {
    %c0_i32 = arith.constant 0 : i32
    %c0_i32_0 = arith.constant 0 : i32
    %c0_i32_1 = arith.constant 0 : i32
    return %c0_i32, %c0_i32_0 : i32, i32
  }
  func.func @transform_13(%arg0: i32) -> (i32, i32) {
    %c0_i32 = arith.constant 0 : i32
    %c0_i32_0 = arith.constant 0 : i32
    return %arg0, %c0_i32 : i32, i32
  }
  func.func @transform_14(%arg0: i32) -> (i32, i32, i32) {
    %c0_i32 = arith.constant 0 : i32
    %c0_i32_0 = arith.constant 0 : i32
    %c0_i32_1 = arith.constant 0 : i32
    return %arg0, %c0_i32, %c0_i32_0 : i32, i32, i32
  }
}

</mosaic_0001>

<llo_original>
// kernel: decoder_forward.1
$region0: #{decoder_forward.1}
  #allocation0 [shape = 'u32[]', space=smem, size = 0x4, offset = 0x4, fixed_abs, tag = 'smem constant byte address 0x4 - core index']
  #allocation1 [shape = 'u32[144,128]{1,0:T(1,128)}', space=vmem, size = 0x12000, scoped, tag = 'internal scratch']
  %s0 = inlined_call_operand.vmem [shape: f32[8,16], index: 0, kind: input, shape index: {}]
  %s1 = inlined_call_operand.vmem [shape: f32[24,8], index: 1, kind: input, shape index: {}]
  %s2 = inlined_call_operand.vmem [shape: f32[24,1], index: 2, kind: input, shape index: {}]
  %s3 = inlined_call_operand.vmem [shape: f32[2,4,8], index: 3, kind: input, shape index: {}]
  %s4 = inlined_call_operand.vmem [shape: f32[2,8,4], index: 4, kind: input, shape index: {}]
  %s5 = inlined_call_operand.vmem [shape: f32[3,4,32], index: 5, kind: input, shape index: {}]
  %s6 = inlined_call_operand.vmem [shape: f32[1,32], index: 6, kind: input, shape index: {}]
  %s7 = inlined_call_operand.vmem [shape: f32[6,32,8], index: 7, kind: input, shape index: {}]
  %s8 = inlined_call_operand.vmem [shape: f32[2,8,32], index: 8, kind: input, shape index: {}]
  %s9 = inlined_call_operand.vmem [shape: f32[3,32,32], index: 9, kind: input, shape index: {}]
  %s10 = inlined_call_operand.vmem [shape: f32[1,32], index: 10, kind: input, shape index: {}]
  %s11 = inlined_call_operand.vmem [shape: f32[3,32,28], index: 11, kind: input, shape index: {}]
  %s12 = inlined_call_operand.vmem [shape: f32[1,28], index: 12, kind: input, shape index: {}]
  %s13 = inlined_call_operand.vmem [shape: f32[48,28], index: 13, kind: output, shape index: {0}]
  %s14 = inlined_call_operand.hbm [shape: f32[2,4,16], index: 14, kind: output, shape index: {1}]
  %15 = xla_tuple %s13, %s14
  %s16 = sld [smem:[#allocation0]]
  $region93: #{decoder_forward.1} parent=0
    _
  %s18 = ssub.s32 1, %s16
  %s19 = scalar_select 0, %s18, %s16
  $region1: #{decoder_forward.1} parent=0
    #allocation2 [shape = 'u8[4096]{0}', space=vmem, size = 0x1000, scoped, tag = 'output window, operand 1']
    #allocation3 [shape = 's32[2]{0}', space=sflag, size = 0x8, scoped, tag = 'scoped memory for decoder_forward.1']
    %20 = vsyncpa [#allocation3], 0
    %s21 = scalar_lea.sflag [#allocation3], 1
    %22 = vsyncpa %s21, 0
    loop: start=0, step=1, limit=4
    $region2: #{decoder_forward.1} parent=1 // loop_pre_header
      _
    $region3: #{decoder_forward.1} parent=1 // loop_header
      %s24 = sphi 0, %s28
      %p25 = scmp.ge.s32.totalorder %s24, 4
      %s32 = sphi 0, %s32
      %s34 = sphi 0, %s32
      %s35 = sphi 0, %s34
      %s49 = sphi 0, %s35
      %s53 = sphi 0, %s53
      %s55 = sphi 0, %s53
      %s56 = sphi 0, %s55
      %s70 = sphi 0, %s56
      %s74 = sphi 0, %s74
      %s76 = sphi 0, %s74
      %s77 = sphi 0, %s76
      %s91 = sphi 0, %s77
      %s97 = sphi 0, %s99
      %s100 = sphi 0, %s97
      %s101 = sphi 0, %s100
      %s117 = sphi 0, %s101
      %s123 = sphi 0, %s125
      %s126 = sphi 0, %s123
      %s127 = sphi 0, %s126
      %s143 = sphi 0, %s127
      %s147 = sphi 0, %s147
      %s149 = sphi 0, %s147
      %s150 = sphi 0, %s149
      %s164 = sphi 0, %s150
      %s168 = sphi 0, %s168
      %s170 = sphi 0, %s168
      %s171 = sphi 0, %s170
      %s185 = sphi 0, %s171
      %s189 = sphi 0, %s189
      %s191 = sphi 0, %s189
      %s192 = sphi 0, %s191
      %s206 = sphi 0, %s192
      %s210 = sphi 0, %s210
      %s212 = sphi 0, %s210
      %s213 = sphi 0, %s212
      %s227 = sphi 0, %s213
      %s231 = sphi 0, %s231
      %s233 = sphi 0, %s231
      %s234 = sphi 0, %s233
      %s248 = sphi 0, %s234
      %s252 = sphi 0, %s252
      %s254 = sphi 0, %s252
      %s255 = sphi 0, %s254
      %s269 = sphi 0, %s255
      %s273 = sphi 0, %s273
      %s275 = sphi 0, %s273
      %s276 = sphi 0, %s275
      %s290 = sphi 0, %s276
      %s294 = sphi 0, %s294
      %s296 = sphi 0, %s294
      %s297 = sphi 0, %s296
      %s311 = sphi 0, %s297
      %s317 = sphi 0, %s319
      %s320 = sphi 0, %s317
      %s321 = sphi 0, %s320
      %s337 = sphi 0, %s321
      %s343 = sphi 0, %s345
      %s346 = sphi 0, %s343
      %s347 = sphi 0, %s346
      %s363 = sphi 0, %s347
    $region4: #{decoder_forward.1} parent=1 // loop_header_branch
      %27 = sbr.rel (%p25) target = $region8
    $region5: #{decoder_forward.1} parent=1 // loop_body
      %s29 = ssub.s32 %s24, 1
      %s30 = ssub.s32 %s24, 2
      %s31 = sadd.s32 %s24, 1
      %s33 = sadd.s32 %s32, 1
      %p36 = scmp.eq.s32.totalorder %s24, 1
      %p37 = scmp.ne.s32.totalorder %s32, %s34
      %p38 = scmp.eq.s32.totalorder %s24, 0
      %p39 = por %p37, %p38
      %p40 = scmp.ne.s32.totalorder %s32, %s34
      %p41 = scmp.eq.s32.totalorder %s29, 1
      %p42 = por %p40, %p41
      %p43 = scmp.ne.s32.totalorder %s34, %s35
      %p44 = scmp.eq.s32.totalorder %s29, 0
      %p45 = por %p43, %p44
      %p46 = scmp.ne.s32.totalorder %s34, %s35
      %p47 = scmp.eq.s32.totalorder %s30, 1
      %p48 = por %p46, %p47
      %p50 = scmp.ne.s32.totalorder %s35, %s49
      %p51 = scmp.eq.s32.totalorder %s30, 0
      %p52 = por %p50, %p51
      %s54 = sadd.s32 %s53, 1
      %p57 = scmp.eq.s32.totalorder %s24, 1
      %p58 = scmp.ne.s32.totalorder %s53, %s55
      %p59 = scmp.eq.s32.totalorder %s24, 0
      %p60 = por %p58, %p59
      %p61 = scmp.ne.s32.totalorder %s53, %s55
      %p62 = scmp.eq.s32.totalorder %s29, 1
      %p63 = por %p61, %p62
      %p64 = scmp.ne.s32.totalorder %s55, %s56
      %p65 = scmp.eq.s32.totalorder %s29, 0
      %p66 = por %p64, %p65
      %p67 = scmp.ne.s32.totalorder %s55, %s56
      %p68 = scmp.eq.s32.totalorder %s30, 1
      %p69 = por %p67, %p68
      %p71 = scmp.ne.s32.totalorder %s56, %s70
      %p72 = scmp.eq.s32.totalorder %s30, 0
      %p73 = por %p71, %p72
      %s75 = sadd.s32 %s74, 1
      %p78 = scmp.eq.s32.totalorder %s24, 1
      %p79 = scmp.ne.s32.totalorder %s74, %s76
      %p80 = scmp.eq.s32.totalorder %s24, 0
      %p81 = por %p79, %p80
      %p82 = scmp.ne.s32.totalorder %s74, %s76
      %p83 = scmp.eq.s32.totalorder %s29, 1
      %p84 = por %p82, %p83
      %p85 = scmp.ne.s32.totalorder %s76, %s77
      %p86 = scmp.eq.s32.totalorder %s29, 0
      %p87 = por %p85, %p86
      %p88 = scmp.ne.s32.totalorder %s76, %s77
      %p89 = scmp.eq.s32.totalorder %s30, 1
      %p90 = por %p88, %p89
      %p92 = scmp.ne.s32.totalorder %s77, %s91
      %p93 = scmp.eq.s32.totalorder %s30, 0
      %p94 = por %p92, %p93
      %s95 = ssub.s32 %s24, %s31
      %p96 = scmp.eq.s32.totalorder %s95, 0
      %s98 = sadd.s32 %s97, 1
      %s99 = scalar_select %p96, %s97, %s98
      %p102 = pneg %p96
      %p103 = scmp.eq.s32.totalorder %s24, 1
      %p104 = por %p102, %p103
      %p105 = scmp.ne.s32.totalorder %s97, %s100
      %p106 = scmp.eq.s32.totalorder %s24, 0
      %p107 = por %p105, %p106
      %p108 = scmp.ne.s32.totalorder %s97, %s100
      %p109 = scmp.eq.s32.totalorder %s29, 1
      %p110 = por %p108, %p109
      %p111 = scmp.ne.s32.totalorder %s100, %s101
      %p112 = scmp.eq.s32.totalorder %s29, 0
      %p113 = por %p111, %p112
      %p114 = scmp.ne.s32.totalorder %s100, %s101
      %p115 = scmp.eq.s32.totalorder %s30, 1
      %p116 = por %p114, %p115
      %p118 = scmp.ne.s32.totalorder %s101, %s117
      %p119 = scmp.eq.s32.totalorder %s30, 0
      %p120 = por %p118, %p119
      %s121 = ssub.s32 %s24, %s31
      %p122 = scmp.eq.s32.totalorder %s121, 0
      %s124 = sadd.s32 %s123, 1
      %s125 = scalar_select %p122, %s123, %s124
      %p128 = pneg %p122
      %p129 = scmp.eq.s32.totalorder %s24, 1
      %p130 = por %p128, %p129
      %p131 = scmp.ne.s32.totalorder %s123, %s126
      %p132 = scmp.eq.s32.totalorder %s24, 0
      %p133 = por %p131, %p132
      %p134 = scmp.ne.s32.totalorder %s123, %s126
      %p135 = scmp.eq.s32.totalorder %s29, 1
      %p136 = por %p134, %p135
      %p137 = scmp.ne.s32.totalorder %s126, %s127
      %p138 = scmp.eq.s32.totalorder %s29, 0
      %p139 = por %p137, %p138
      %p140 = scmp.ne.s32.totalorder %s126, %s127
      %p141 = scmp.eq.s32.totalorder %s30, 1
      %p142 = por %p140, %p141
      %p144 = scmp.ne.s32.totalorder %s127, %s143
      %p145 = scmp.eq.s32.totalorder %s30, 0
      %p146 = por %p144, %p145
      %s148 = sadd.s32 %s147, 1
      %p151 = scmp.eq.s32.totalorder %s24, 1
      %p152 = scmp.ne.s32.totalorder %s147, %s149
      %p153 = scmp.eq.s32.totalorder %s24, 0
      %p154 = por %p152, %p153
      %p155 = scmp.ne.s32.totalorder %s147, %s149
      %p156 = scmp.eq.s32.totalorder %s29, 1
      %p157 = por %p155, %p156
      %p158 = scmp.ne.s32.totalorder %s149, %s150
      %p159 = scmp.eq.s32.totalorder %s29, 0
      %p160 = por %p158, %p159
      %p161 = scmp.ne.s32.totalorder %s149, %s150
      %p162 = scmp.eq.s32.totalorder %s30, 1
      %p163 = por %p161, %p162
      %p165 = scmp.ne.s32.totalorder %s150, %s164
      %p166 = scmp.eq.s32.totalorder %s30, 0
      %p167 = por %p165, %p166
      %s169 = sadd.s32 %s168, 1
      %p172 = scmp.eq.s32.totalorder %s24, 1
      %p173 = scmp.ne.s32.totalorder %s168, %s170
      %p174 = scmp.eq.s32.totalorder %s24, 0
      %p175 = por %p173, %p174
      %p176 = scmp.ne.s32.totalorder %s168, %s170
      %p177 = scmp.eq.s32.totalorder %s29, 1
      %p178 = por %p176, %p177
      %p179 = scmp.ne.s32.totalorder %s170, %s171
      %p180 = scmp.eq.s32.totalorder %s29, 0
      %p181 = por %p179, %p180
      %p182 = scmp.ne.s32.totalorder %s170, %s171
      %p183 = scmp.eq.s32.totalorder %s30, 1
      %p184 = por %p182, %p183
      %p186 = scmp.ne.s32.totalorder %s171, %s185
      %p187 = scmp.eq.s32.totalorder %s30, 0
      %p188 = por %p186, %p187
      %s190 = sadd.s32 %s189, 1
      %p193 = scmp.eq.s32.totalorder %s24, 1
      %p194 = scmp.ne.s32.totalorder %s189, %s191
      %p195 = scmp.eq.s32.totalorder %s24, 0
      %p196 = por %p194, %p195
      %p197 = scmp.ne.s32.totalorder %s189, %s191
      %p198 = scmp.eq.s32.totalorder %s29, 1
      %p199 = por %p197, %p198
      %p200 = scmp.ne.s32.totalorder %s191, %s192
      %p201 = scmp.eq.s32.totalorder %s29, 0
      %p202 = por %p200, %p201
      %p203 = scmp.ne.s32.totalorder %s191, %s192
      %p204 = scmp.eq.s32.totalorder %s30, 1
      %p205 = por %p203, %p204
      %p207 = scmp.ne.s32.totalorder %s192, %s206
      %p208 = scmp.eq.s32.totalorder %s30, 0
      %p209 = por %p207, %p208
      %s211 = sadd.s32 %s210, 1
      %p214 = scmp.eq.s32.totalorder %s24, 1
      %p215 = scmp.ne.s32.totalorder %s210, %s212
      %p216 = scmp.eq.s32.totalorder %s24, 0
      %p217 = por %p215, %p216
      %p218 = scmp.ne.s32.totalorder %s210, %s212
      %p219 = scmp.eq.s32.totalorder %s29, 1
      %p220 = por %p218, %p219
      %p221 = scmp.ne.s32.totalorder %s212, %s213
      %p222 = scmp.eq.s32.totalorder %s29, 0
      %p223 = por %p221, %p222
      %p224 = scmp.ne.s32.totalorder %s212, %s213
      %p225 = scmp.eq.s32.totalorder %s30, 1
      %p226 = por %p224, %p225
      %p228 = scmp.ne.s32.totalorder %s213, %s227
      %p229 = scmp.eq.s32.totalorder %s30, 0
      %p230 = por %p228, %p229
      %s232 = sadd.s32 %s231, 1
      %p235 = scmp.eq.s32.totalorder %s24, 1
      %p236 = scmp.ne.s32.totalorder %s231, %s233
      %p237 = scmp.eq.s32.totalorder %s24, 0
      %p238 = por %p236, %p237
      %p239 = scmp.ne.s32.totalorder %s231, %s233
      %p240 = scmp.eq.s32.totalorder %s29, 1
      %p241 = por %p239, %p240
      %p242 = scmp.ne.s32.totalorder %s233, %s234
      %p243 = scmp.eq.s32.totalorder %s29, 0
      %p244 = por %p242, %p243
      %p245 = scmp.ne.s32.totalorder %s233, %s234
      %p246 = scmp.eq.s32.totalorder %s30, 1
      %p247 = por %p245, %p246
      %p249 = scmp.ne.s32.totalorder %s234, %s248
      %p250 = scmp.eq.s32.totalorder %s30, 0
      %p251 = por %p249, %p250
      %s253 = sadd.s32 %s252, 1
      %p256 = scmp.eq.s32.totalorder %s24, 1
      %p257 = scmp.ne.s32.totalorder %s252, %s254
      %p258 = scmp.eq.s32.totalorder %s24, 0
      %p259 = por %p257, %p258
      %p260 = scmp.ne.s32.totalorder %s252, %s254
      %p261 = scmp.eq.s32.totalorder %s29, 1
      %p262 = por %p260, %p261
      %p263 = scmp.ne.s32.totalorder %s254, %s255
      %p264 = scmp.eq.s32.totalorder %s29, 0
      %p265 = por %p263, %p264
      %p266 = scmp.ne.s32.totalorder %s254, %s255
      %p267 = scmp.eq.s32.totalorder %s30, 1
      %p268 = por %p266, %p267
      %p270 = scmp.ne.s32.totalorder %s255, %s269
      %p271 = scmp.eq.s32.totalorder %s30, 0
      %p272 = por %p270, %p271
      %s274 = sadd.s32 %s273, 1
      %p277 = scmp.eq.s32.totalorder %s24, 1
      %p278 = scmp.ne.s32.totalorder %s273, %s275
      %p279 = scmp.eq.s32.totalorder %s24, 0
      %p280 = por %p278, %p279
      %p281 = scmp.ne.s32.totalorder %s273, %s275
      %p282 = scmp.eq.s32.totalorder %s29, 1
      %p283 = por %p281, %p282
      %p284 = scmp.ne.s32.totalorder %s275, %s276
      %p285 = scmp.eq.s32.totalorder %s29, 0
      %p286 = por %p284, %p285
      %p287 = scmp.ne.s32.totalorder %s275, %s276
      %p288 = scmp.eq.s32.totalorder %s30, 1
      %p289 = por %p287, %p288
      %p291 = scmp.ne.s32.totalorder %s276, %s290
      %p292 = scmp.eq.s32.totalorder %s30, 0
      %p293 = por %p291, %p292
      %s295 = sadd.s32 %s294, 1
      %p298 = scmp.eq.s32.totalorder %s24, 1
      %p299 = scmp.ne.s32.totalorder %s294, %s296
      %p300 = scmp.eq.s32.totalorder %s24, 0
      %p301 = por %p299, %p300
      %p302 = scmp.ne.s32.totalorder %s294, %s296
      %p303 = scmp.eq.s32.totalorder %s29, 1
      %p304 = por %p302, %p303
      %p305 = scmp.ne.s32.totalorder %s296, %s297
      %p306 = scmp.eq.s32.totalorder %s29, 0
      %p307 = por %p305, %p306
      %p308 = scmp.ne.s32.totalorder %s296, %s297
      %p309 = scmp.eq.s32.totalorder %s30, 1
      %p310 = por %p308, %p309
      %p312 = scmp.ne.s32.totalorder %s297, %s311
      %p313 = scmp.eq.s32.totalorder %s30, 0
      %p314 = por %p312, %p313
      %s315 = ssub.s32 %s24, %s31
      %p316 = scmp.eq.s32.totalorder %s315, 0
      %s318 = sadd.s32 %s317, 1
      %s319 = scalar_select %p316, %s317, %s318
      %p322 = pneg %p316
      %p323 = scmp.eq.s32.totalorder %s24, 1
      %p324 = por %p322, %p323
      %p325 = scmp.ne.s32.totalorder %s317, %s320
      %p326 = scmp.eq.s32.totalorder %s24, 0
      %p327 = por %p325, %p326
      %p328 = scmp.ne.s32.totalorder %s317, %s320
      %p329 = scmp.eq.s32.totalorder %s29, 1
      %p330 = por %p328, %p329
      %p331 = scmp.ne.s32.totalorder %s320, %s321
      %p332 = scmp.eq.s32.totalorder %s29, 0
      %p333 = por %p331, %p332
      %p334 = scmp.ne.s32.totalorder %s320, %s321
      %p335 = scmp.eq.s32.totalorder %s30, 1
      %p336 = por %p334, %p335
      %p338 = scmp.ne.s32.totalorder %s321, %s337
      %p339 = scmp.eq.s32.totalorder %s30, 0
      %p340 = por %p338, %p339
      %s341 = ssub.s32 %s24, %s31
      %p342 = scmp.eq.s32.totalorder %s341, 0
      %s344 = sadd.s32 %s343, 1
      %s345 = scalar_select %p342, %s343, %s344
      %p348 = pneg %p342
      %p349 = scmp.eq.s32.totalorder %s24, 1
      %p350 = por %p348, %p349
      %p351 = scmp.ne.s32.totalorder %s343, %s346
      %p352 = scmp.eq.s32.totalorder %s24, 0
      %p353 = por %p351, %p352
      %p354 = scmp.ne.s32.totalorder %s343, %s346
      %p355 = scmp.eq.s32.totalorder %s29, 1
      %p356 = por %p354, %p355
      %p357 = scmp.ne.s32.totalorder %s346, %s347
      %p358 = scmp.eq.s32.totalorder %s29, 0
      %p359 = por %p357, %p358
      %p360 = scmp.ne.s32.totalorder %s346, %s347
      %p361 = scmp.eq.s32.totalorder %s30, 1
      %p362 = por %p360, %p361
      %p364 = scmp.ne.s32.totalorder %s347, %s363
      %p365 = scmp.eq.s32.totalorder %s30, 0
      %p366 = por %p364, %p365
      %p367 = scmp.le.s32.totalorder 1, %s24
      %p368 = scmp.lt.s32.totalorder %s24, 3
      %p369 = pnand %p367, %p368
      %p370 = pneg %p369
      // Predicated region
      $region9: #{decoder_forward.1} parent=5 // pred_check
        _
      $region10: #{decoder_forward.1} parent=5 // pred_check_branch
        %372 = sbr.rel (%p369) target = $region12
      $region11: #{decoder_forward.1} parent=5 // pred_region
        %s373 = ssub.s32 %s24, 1
        // Predicated region
        $region13: #{decoder_forward.1} parent=11 // pred_check
          %p374 = pneg %p45
        $region14: #{decoder_forward.1} parent=11 // pred_check_branch
          %376 = sbr.rel (%p374) target = $region16
        $region15: #{decoder_forward.1} parent=11 // pred_region
          _
        $region16: #{decoder_forward.1} parent=11 // pred_fallthru
          _
        // Predicated region
        $region17: #{decoder_forward.1} parent=11 // pred_check
          %p377 = pneg %p66
        $region18: #{decoder_forward.1} parent=11 // pred_check_branch
          %379 = sbr.rel (%p377) target = $region20
        $region19: #{decoder_forward.1} parent=11 // pred_region
          _
        $region20: #{decoder_forward.1} parent=11 // pred_fallthru
          _
        // Predicated region
        $region21: #{decoder_forward.1} parent=11 // pred_check
          %p380 = pneg %p87
        $region22: #{decoder_forward.1} parent=11 // pred_check_branch
          %382 = sbr.rel (%p380) target = $region24
        $region23: #{decoder_forward.1} parent=11 // pred_region
          _
        $region24: #{decoder_forward.1} parent=11 // pred_fallthru
          _
        // Predicated region
        $region25: #{decoder_forward.1} parent=11 // pred_check
          %p383 = pneg %p160
        $region26: #{decoder_forward.1} parent=11 // pred_check_branch
          %385 = sbr.rel (%p383) target = $region28
        $region27: #{decoder_forward.1} parent=11 // pred_region
          _
        $region28: #{decoder_forward.1} parent=11 // pred_fallthru
          _
        // Predicated region
        $region29: #{decoder_forward.1} parent=11 // pred_check
          %p386 = pneg %p181
        $region30: #{decoder_forward.1} parent=11 // pred_check_branch
          %388 = sbr.rel (%p386) target = $region32
        $region31: #{decoder_forward.1} parent=11 // pred_region
          _
        $region32: #{decoder_forward.1} parent=11 // pred_fallthru
          _
        // Predicated region
        $region33: #{decoder_forward.1} parent=11 // pred_check
          %p389 = pneg %p202
        $region34: #{decoder_forward.1} parent=11 // pred_check_branch
          %391 = sbr.rel (%p389) target = $region36
        $region35: #{decoder_forward.1} parent=11 // pred_region
          _
        $region36: #{decoder_forward.1} parent=11 // pred_fallthru
          _
        // Predicated region
        $region37: #{decoder_forward.1} parent=11 // pred_check
          %p392 = pneg %p223
        $region38: #{decoder_forward.1} parent=11 // pred_check_branch
          %394 = sbr.rel (%p392) target = $region40
        $region39: #{decoder_forward.1} parent=11 // pred_region
          _
        $region40: #{decoder_forward.1} parent=11 // pred_fallthru
          _
        // Predicated region
        $region41: #{decoder_forward.1} parent=11 // pred_check
          %p395 = pneg %p244
        $region42: #{decoder_forward.1} parent=11 // pred_check_branch
          %397 = sbr.rel (%p395) target = $region44
        $region43: #{decoder_forward.1} parent=11 // pred_region
          _
        $region44: #{decoder_forward.1} parent=11 // pred_fallthru
          _
        // Predicated region
        $region45: #{decoder_forward.1} parent=11 // pred_check
          %p398 = pneg %p265
        $region46: #{decoder_forward.1} parent=11 // pred_check_branch
          %400 = sbr.rel (%p398) target = $region48
        $region47: #{decoder_forward.1} parent=11 // pred_region
          _
        $region48: #{decoder_forward.1} parent=11 // pred_fallthru
          _
        // Predicated region
        $region49: #{decoder_forward.1} parent=11 // pred_check
          %p401 = pneg %p286
        $region50: #{decoder_forward.1} parent=11 // pred_check_branch
          %403 = sbr.rel (%p401) target = $region52
        $region51: #{decoder_forward.1} parent=11 // pred_region
          _
        $region52: #{decoder_forward.1} parent=11 // pred_fallthru
          _
        // Predicated region
        $region53: #{decoder_forward.1} parent=11 // pred_check
          %p404 = pneg %p307
        $region54: #{decoder_forward.1} parent=11 // pred_check_branch
          %406 = sbr.rel (%p404) target = $region56
        $region55: #{decoder_forward.1} parent=11 // pred_region
          _
        $region56: #{decoder_forward.1} parent=11 // pred_fallthru
          _
      $region12: #{decoder_forward.1} parent=5 // pred_fallthru
        _
      %p407 = scmp.lt.s32.totalorder %s24, 2
      // Predicated region
      $region57: #{decoder_forward.1} parent=5 // pred_check
        %p408 = pneg %p407
      $region58: #{decoder_forward.1} parent=5 // pred_check_branch
        %410 = sbr.rel (%p408) target = $region60
      $region59: #{decoder_forward.1} parent=5 // pred_region
        // Predicated region
        $region61: #{decoder_forward.1} parent=59 // pred_check
          %p411 = pneg %p107
        $region62: #{decoder_forward.1} parent=59 // pred_check_branch
          %413 = sbr.rel (%p411) target = $region64
        $region63: #{decoder_forward.1} parent=59 // pred_region
          %p414 = scmp.lt.s32.totalorder %s24, 1
          %s415 = scalar_select %p414, %s24, 1
          %s416 = smul.addr %s415, 4
          %s417 = scalar_lea.vmem %s3, %s416
        $region64: #{decoder_forward.1} parent=59 // pred_fallthru
          _
        // Predicated region
        $region65: #{decoder_forward.1} parent=59 // pred_check
          %p418 = pneg %p133
        $region66: #{decoder_forward.1} parent=59 // pred_check_branch
          %420 = sbr.rel (%p418) target = $region68
        $region67: #{decoder_forward.1} parent=59 // pred_region
          %p421 = scmp.lt.s32.totalorder %s24, 1
          %s422 = scalar_select %p421, %s24, 1
          %s423 = smul.addr %s422, 8
          %s424 = scalar_lea.vmem %s4, %s423
        $region68: #{decoder_forward.1} parent=59 // pred_fallthru
          _
      $region60: #{decoder_forward.1} parent=5 // pred_fallthru
        _
      %p425 = scmp.le.s32.totalorder 1, %s24
      %p426 = scmp.lt.s32.totalorder %s24, 3
      %p427 = pnand %p425, %p426
      %p428 = pneg %p427
      // Predicated region
      $region69: #{decoder_forward.1} parent=5 // pred_check
        _
      $region70: #{decoder_forward.1} parent=5 // pred_check_branch
        %430 = sbr.rel (%p427) target = $region72
      $region71: #{decoder_forward.1} parent=5 // pred_region
        %s431 = ssub.s32 %s24, 1
        %p432 = pneg %p45
        %p433 = pneg %p42
        %p434 = pneg %p66
        %p435 = pneg %p63
        %p436 = pneg %p87
        %p437 = pneg %p84
        %p438 = scmp.lt.s32.totalorder %s29, 1
        %s439 = scalar_select %p438, %s29, 1
        %s440 = smul.addr %s439, 4
        %s441 = scalar_lea.vmem %s3, %s440
        %p442 = pneg %p113
        %p443 = pneg %p110
        %p444 = scmp.lt.s32.totalorder %s29, 1
        %s445 = scalar_select %p444, %s29, 1
        %s446 = smul.addr %s445, 8
        %s447 = scalar_lea.vmem %s4, %s446
        %p448 = pneg %p139
        %p449 = pneg %p136
        %p450 = pneg %p160
        %p451 = pneg %p157
        %p452 = pneg %p181
        %p453 = pneg %p178
        %p454 = pneg %p202
        %p455 = pneg %p199
        %p456 = pneg %p223
        %p457 = pneg %p220
        %p458 = pneg %p244
        %p459 = pneg %p241
        %p460 = pneg %p265
        %p461 = pneg %p262
        %p462 = pneg %p286
        %p463 = pneg %p283
        %p464 = pneg %p307
        %p465 = pneg %p304
        %p466 = pneg %p333
        %p467 = pneg %p330
        %s468 = smul.u32 3, %s29
        %p469 = scmp.lt.s32.totalorder %s468, 5
        %s470 = scalar_select %p469, %s468, 5
        %s471 = smul.addr %s470, 8
        %s472 = scalar_lea.vmem %s13, %s471
        %p473 = pneg %p359
        %p474 = pneg %p356
        %s475 = sand.u32 %s346, 1
        %s476 = scalar_lea.sflag [#allocation3], %s475
        %s477 = sand.u32 %s346, 1
        %s478 = smul.addr %s477, 4
        %s479 = scalar_lea.vmem [#allocation2], %s478
        %p480 = scmp.lt.s32.totalorder %s29, 1
        %s481 = scalar_select %p480, %s29, 1
        %s482 = smul.addr %s481, 4
        %s483 = scalar_lea.vmem %s3, %s482
        %p484 = scmp.lt.s32.totalorder %s29, 1
        %s485 = scalar_select %p484, %s29, 1
        %s486 = smul.addr %s485, 8
        %s487 = scalar_lea.vmem %s4, %s486
        %s488 = smul.u32 3, %s29
        %p489 = scmp.lt.s32.totalorder %s488, 5
        %s490 = scalar_select %p489, %s488, 5
        %s491 = smul.addr %s490, 8
        %s492 = scalar_lea.vmem %s13, %s491
        %s493 = smul.u32 3, %s29
        %v494 = vld [vmem:[%s2] sm:$0xff]
        %v495 = vld [vmem:[%s2 + $0x8] sm:$0xff]
        %v496 = vld [vmem:[%s2 + $0x10] sm:$0xff]
        %v497 = vld [vmem:[%s483] sm:$0xf]
        %v498 = vld [vmem:[%s0] sm:$0xff]
        %vm499 = vcmask 64512
        %v501 = vsel %vm499, %v497, 0
        %503 = vmatprep.subr.mxu0 0.0
        %504 = vmatpush1.msra.mxu0 0.0
        %505 = vmatprep.subr.mxu0 0.0
        %506 = vmatpush1.msra.mxu0 0.0
        %507 = vmatprep.subr.mxu0 0.0
        %508 = vmatpush1.msra.mxu0 0.0
        %509 = vmatprep.subr.mxu0 0.0
        %510 = vmatpush1.msra.mxu0 0.0
        %511 = vmatprep.subr.mxu0 0.0
        %512 = vmatpush1.msra.mxu0 0.0
        %513 = vmatprep.subr.mxu0 0.0
        %514 = vmatpush1.msra.mxu0 0.0
        %515 = vmatprep.subr.mxu0 0.0
        %516 = vmatpush1.msra.mxu0 0.0
        %517 = vmatprep.subr.mxu0 0.0
        %518 = vmatpush1.msra.mxu0 0.0
        %519 = vmatprep.subr.mxu0 0.0
        %520 = vmatpush1.msra.mxu0 0.0
        %521 = vmatprep.subr.mxu0 0.0
        %522 = vmatpush1.msra.mxu0 0.0
        %523 = vmatprep.subr.mxu0 0.0
        %524 = vmatpush1.msra.mxu0 0.0
        %525 = vmatprep.subr.mxu0 0.0
        %526 = vmatpush1.msra.mxu0 0.0
        %527 = vmatprep.subr.mxu0 0.0
        %528 = vmatpush1.msra.mxu0 0.0
        %529 = vmatprep.subr.mxu0 0.0
        %530 = vmatpush1.msra.mxu0 0.0
        %531 = vmatprep.subr.mxu0 0.0
        %532 = vmatpush1.msra.mxu0 0.0
        %533 = vmatprep.subr.mxu0 0.0
        %534 = vmatpush1.msra.mxu0 %v498
        %535 = vmatprep.subr.mxu0 0.0
        %536 = vmatpush2.msra.mxu0 0.0
        %537 = vmatprep.subr.mxu0 0.0
        %538 = vmatpush2.msra.mxu0 0.0
        %539 = vmatprep.subr.mxu0 0.0
        %540 = vmatpush2.msra.mxu0 0.0
        %541 = vmatprep.subr.mxu0 0.0
        %542 = vmatpush2.msra.mxu0 0.0
        %543 = vmatprep.subr.mxu0 0.0
        %544 = vmatpush2.msra.mxu0 0.0
        %545 = vmatprep.subr.mxu0 0.0
        %546 = vmatpush2.msra.mxu0 0.0
        %547 = vmatprep.subr.mxu0 0.0
        %548 = vmatpush2.msra.mxu0 0.0
        %549 = vmatprep.subr.mxu0 0.0
        %550 = vmatpush2.msra.mxu0 0.0
        %551 = vmatprep.subr.mxu0 0.0
        %552 = vmatpush2.msra.mxu0 0.0
        %553 = vmatprep.subr.mxu0 0.0
        %554 = vmatpush2.msra.mxu0 0.0
        %555 = vmatprep.subr.mxu0 0.0
        %556 = vmatpush2.msra.mxu0 0.0
        %557 = vmatprep.subr.mxu0 0.0
        %558 = vmatpush2.msra.mxu0 0.0
        %559 = vmatprep.subr.mxu0 0.0
        %560 = vmatpush2.msra.mxu0 0.0
        %561 = vmatprep.subr.mxu0 0.0
        %562 = vmatpush2.msra.mxu0 0.0
        %563 = vmatprep.subr.mxu0 0.0
        %564 = vmatpush2.msra.mxu0 0.0
        %565 = vmatprep.subr.mxu0 0.0
        %566 = vmatpush2.msra.mxu0 0.0
        %567 = vmatprep.mubr.f32.mxu0 0.0
        %568 = vmatmul.mubr.f32.gmra.mxu0 %v501
        %v569 = vpop.f32.mrf.mxu0
        %v570 = vadd.f32 0.0, %v569
        %v571 = vpop.f32.mrf.mxu0
        %572 = vdwg.mxu0
        %vm573 = vcmask 125952
        %574 = vst.msk [vmem:[%s479] sm:$0xf] %vm573, %v570
        %v575 = vld [vmem:[%s1] sm:$0xff]
        %v576 = vld [vmem:[%s1 + $0x8] sm:$0xff]
        %v577 = vld [vmem:[%s1 + $0x10] sm:$0xff]
        %v578 = vld [vmem:[%s487] sm:$0xff]
        %v580 = vsel %vm499, %v575, 0
        %v583 = vsel %vm499, %v576, 0
        %v586 = vsel %vm499, %v577, 0
        %588 = vmatprep.subr.mxu0 0.0
        %589 = vmatpush1.msra.mxu0 0.0
        %590 = vmatprep.subr.mxu0 0.0
        %591 = vmatpush1.msra.mxu0 0.0
        %592 = vmatprep.subr.mxu0 0.0
        %593 = vmatpush1.msra.mxu0 0.0
        %594 = vmatprep.subr.mxu0 0.0
        %595 = vmatpush1.msra.mxu0 0.0
        %596 = vmatprep.subr.mxu0 0.0
        %597 = vmatpush1.msra.mxu0 0.0
        %598 = vmatprep.subr.mxu0 0.0
        %599 = vmatpush1.msra.mxu0 0.0
        %600 = vmatprep.subr.mxu0 0.0
        %601 = vmatpush1.msra.mxu0 0.0
        %602 = vmatprep.subr.mxu0 0.0
        %603 = vmatpush1.msra.mxu0 0.0
        %604 = vmatprep.subr.mxu0 0.0
        %605 = vmatpush1.msra.mxu0 0.0
        %606 = vmatprep.subr.mxu0 0.0
        %607 = vmatpush1.msra.mxu0 0.0
        %608 = vmatprep.subr.mxu0 0.0
        %609 = vmatpush1.msra.mxu0 0.0
        %610 = vmatprep.subr.mxu0 0.0
        %611 = vmatpush1.msra.mxu0 0.0
        %612 = vmatprep.subr.mxu0 0.0
        %613 = vmatpush1.msra.mxu0 0.0
        %614 = vmatprep.subr.mxu0 0.0
        %615 = vmatpush1.msra.mxu0 0.0
        %616 = vmatprep.subr.mxu0 0.0
        %617 = vmatpush1.msra.mxu0 0.0
        %618 = vmatprep.subr.mxu0 0.0
        %619 = vmatpush1.msra.mxu0 %v578
        %620 = vmatprep.subr.mxu0 0.0
        %621 = vmatpush2.msra.mxu0 0.0
        %622 = vmatprep.subr.mxu0 0.0
        %623 = vmatpush2.msra.mxu0 0.0
        %624 = vmatprep.subr.mxu0 0.0
        %625 = vmatpush2.msra.mxu0 0.0
        %626 = vmatprep.subr.mxu0 0.0
        %627 = vmatpush2.msra.mxu0 0.0
        %628 = vmatprep.subr.mxu0 0.0
        %629 = vmatpush2.msra.mxu0 0.0
        %630 = vmatprep.subr.mxu0 0.0
        %631 = vmatpush2.msra.mxu0 0.0
        %632 = vmatprep.subr.mxu0 0.0
        %633 = vmatpush2.msra.mxu0 0.0
        %634 = vmatprep.subr.mxu0 0.0
        %635 = vmatpush2.msra.mxu0 0.0
        %636 = vmatprep.subr.mxu0 0.0
        %637 = vmatpush2.msra.mxu0 0.0
        %638 = vmatprep.subr.mxu0 0.0
        %639 = vmatpush2.msra.mxu0 0.0
        %640 = vmatprep.subr.mxu0 0.0
        %641 = vmatpush2.msra.mxu0 0.0
        %642 = vmatprep.subr.mxu0 0.0
        %643 = vmatpush2.msra.mxu0 0.0
        %644 = vmatprep.subr.mxu0 0.0
        %645 = vmatpush2.msra.mxu0 0.0
        %646 = vmatprep.subr.mxu0 0.0
        %647 = vmatpush2.msra.mxu0 0.0
        %648 = vmatprep.subr.mxu0 0.0
        %649 = vmatpush2.msra.mxu0 0.0
        %650 = vmatprep.subr.mxu0 0.0
        %651 = vmatpush2.msra.mxu0 0.0
        %652 = vmatprep.mubr.f32.mxu0 0.0
        %653 = vmatmul.mubr.f32.gmra.mxu0 %v580
        %v654 = vpop.f32.mrf.mxu0
        %v655 = vadd.f32 0.0, %v654
        %v656 = vpop.f32.mrf.mxu0
        %657 = vmatprep.mubr.f32.mxu0 0.0
        %658 = vmatmul.mubr.f32.gmra.mxu0 %v583
        %v659 = vpop.f32.mrf.mxu0
        %v660 = vadd.f32 0.0, %v659
        %v661 = vpop.f32.mrf.mxu0
        %662 = vmatprep.mubr.f32.mxu0 0.0
        %663 = vmatmul.mubr.f32.gmra.mxu0 %v586
        %v664 = vpop.f32.mrf.mxu0
        %v665 = vadd.f32 0.0, %v664
        %v666 = vpop.f32.mrf.mxu0
        %667 = vdwg.mxu0
        %v668 = vld [vmem:[%s5] sm:$0xf]
        %s669 = scalar_lea.vmem %s5, 4
        %v670 = vld [vmem:[%s669] sm:$0xf]
        %s671 = scalar_lea.vmem %s5, 8
        %v672 = vld [vmem:[%s671] sm:$0xf]
        %v673 = vld [vmem:[%s6] sm:$0x1]
        %v674 = vrot.slane %v655, 7
        %v675 = vrot.slane %v660, 7
        %v676 = vrot.slane %v665, 7
        %v677 = vlaneseq
        %v678 = vshrl.u32 %v677, 7
        %vm679 = vcmp.lt.s32.totalorder %v678, 1
        %v680 = vsel %vm679, %v675, %v676
        %v681 = vsel %vm679, %v674, %v675
        %v682 = vsel %vm679, %v676, %v674
        %v683 = vrot.slane %v655, 1
        %v684 = vrot.slane %v660, 1
        %v685 = vrot.slane %v665, 1
        %vm686 = vcmp.lt.s32.totalorder %v678, 7
        %v687 = vsel %vm686, %v684, %v685
        %v688 = vsel %vm686, %v683, %v684
        %v689 = vsel %vm686, %v685, %v683
        %vm690 = vcmask 31744
        %v692 = vsel %vm690, %v655, 0
        %v695 = vsel %vm690, %v660, 0
        %v698 = vsel %vm690, %v665, 0
        %vm700 = vcmask 1043456
        %v702 = vsel %vm700, %v670, 0
        %704 = vmatprep.subr.mxu0 0.0
        %705 = vmatpush1.msra.mxu0 0.0
        %706 = vmatprep.subr.mxu0 0.0
        %707 = vmatpush1.msra.mxu0 0.0
        %708 = vmatprep.subr.mxu0 0.0
        %709 = vmatpush1.msra.mxu0 0.0
        %710 = vmatprep.subr.mxu0 0.0
        %711 = vmatpush1.msra.mxu0 0.0
        %712 = vmatprep.subr.mxu0 0.0
        %713 = vmatpush1.msra.mxu0 0.0
        %714 = vmatprep.subr.mxu0 0.0
        %715 = vmatpush1.msra.mxu0 0.0
        %716 = vmatprep.subr.mxu0 0.0
        %717 = vmatpush1.msra.mxu0 0.0
        %718 = vmatprep.subr.mxu0 0.0
        %719 = vmatpush1.msra.mxu0 0.0
        %720 = vmatprep.subr.mxu0 0.0
        %721 = vmatpush1.msra.mxu0 0.0
        %722 = vmatprep.subr.mxu0 0.0
        %723 = vmatpush1.msra.mxu0 0.0
        %724 = vmatprep.subr.mxu0 0.0
        %725 = vmatpush1.msra.mxu0 0.0
        %726 = vmatprep.subr.mxu0 0.0
        %727 = vmatpush1.msra.mxu0 0.0
        %728 = vmatprep.subr.mxu0 0.0
        %729 = vmatpush1.msra.mxu0 0.0
        %730 = vmatprep.subr.mxu0 0.0
        %731 = vmatpush1.msra.mxu0 0.0
        %732 = vmatprep.subr.mxu0 0.0
        %733 = vmatpush1.msra.mxu0 0.0
        %734 = vmatprep.subr.mxu0 0.0
        %735 = vmatpush1.msra.mxu0 %v702
        %736 = vmatprep.subr.mxu0 0.0
        %737 = vmatpush2.msra.mxu0 0.0
        %738 = vmatprep.subr.mxu0 0.0
        %739 = vmatpush2.msra.mxu0 0.0
        %740 = vmatprep.subr.mxu0 0.0
        %741 = vmatpush2.msra.mxu0 0.0
        %742 = vmatprep.subr.mxu0 0.0
        %743 = vmatpush2.msra.mxu0 0.0
        %744 = vmatprep.subr.mxu0 0.0
        %745 = vmatpush2.msra.mxu0 0.0
        %746 = vmatprep.subr.mxu0 0.0
        %747 = vmatpush2.msra.mxu0 0.0
        %748 = vmatprep.subr.mxu0 0.0
        %749 = vmatpush2.msra.mxu0 0.0
        %750 = vmatprep.subr.mxu0 0.0
        %751 = vmatpush2.msra.mxu0 0.0
        %752 = vmatprep.subr.mxu0 0.0
        %753 = vmatpush2.msra.mxu0 0.0
        %754 = vmatprep.subr.mxu0 0.0
        %755 = vmatpush2.msra.mxu0 0.0
        %756 = vmatprep.subr.mxu0 0.0
        %757 = vmatpush2.msra.mxu0 0.0
        %758 = vmatprep.subr.mxu0 0.0
        %759 = vmatpush2.msra.mxu0 0.0
        %760 = vmatprep.subr.mxu0 0.0
        %761 = vmatpush2.msra.mxu0 0.0
        %762 = vmatprep.subr.mxu0 0.0
        %763 = vmatpush2.msra.mxu0 0.0
        %764 = vmatprep.subr.mxu0 0.0
        %765 = vmatpush2.msra.mxu0 0.0
        %766 = vmatprep.subr.mxu0 0.0
        %767 = vmatpush2.msra.mxu0 0.0
        %768 = vmatprep.mubr.f32.mxu0 0.0
        %769 = vmatmul.mubr.f32.gmra.mxu0 %v692
        %v770 = vpop.f32.mrf.mxu0
        %v771 = vadd.f32 0.0, %v770
        %v772 = vpop.f32.mrf.mxu0
        %773 = vmatprep.mubr.f32.mxu0 0.0
        %774 = vmatmul.mubr.f32.gmra.mxu0 %v695
        %v775 = vpop.f32.mrf.mxu0
        %v776 = vadd.f32 0.0, %v775
        %v777 = vpop.f32.mrf.mxu0
        %778 = vmatprep.mubr.f32.mxu0 0.0
        %779 = vmatmul.mubr.f32.gmra.mxu0 %v698
        %v780 = vpop.f32.mrf.mxu0
        %v781 = vadd.f32 0.0, %v780
        %v782 = vpop.f32.mrf.mxu0
        %783 = vdwg.mxu0
        %v785 = vsel %vm690, %v682, 0
        %v788 = vsel %vm690, %v681, 0
        %v791 = vsel %vm690, %v680, 0
        %v794 = vsel %vm700, %v668, 0
        %796 = vmatprep.subr.mxu0 0.0
        %797 = vmatpush1.msra.mxu0 0.0
        %798 = vmatprep.subr.mxu0 0.0
        %799 = vmatpush1.msra.mxu0 0.0
        %800 = vmatprep.subr.mxu0 0.0
        %801 = vmatpush1.msra.mxu0 0.0
        %802 = vmatprep.subr.mxu0 0.0
        %803 = vmatpush1.msra.mxu0 0.0
        %804 = vmatprep.subr.mxu0 0.0
        %805 = vmatpush1.msra.mxu0 0.0
        %806 = vmatprep.subr.mxu0 0.0
        %807 = vmatpush1.msra.mxu0 0.0
        %808 = vmatprep.subr.mxu0 0.0
        %809 = vmatpush1.msra.mxu0 0.0
        %810 = vmatprep.subr.mxu0 0.0
        %811 = vmatpush1.msra.mxu0 0.0
        %812 = vmatprep.subr.mxu0 0.0
        %813 = vmatpush1.msra.mxu0 0.0
        %814 = vmatprep.subr.mxu0 0.0
        %815 = vmatpush1.msra.mxu0 0.0
        %816 = vmatprep.subr.mxu0 0.0
        %817 = vmatpush1.msra.mxu0 0.0
        %818 = vmatprep.subr.mxu0 0.0
        %819 = vmatpush1.msra.mxu0 0.0
        %820 = vmatprep.subr.mxu0 0.0
        %821 = vmatpush1.msra.mxu0 0.0
        %822 = vmatprep.subr.mxu0 0.0
        %823 = vmatpush1.msra.mxu0 0.0
        %824 = vmatprep.subr.mxu0 0.0
        %825 = vmatpush1.msra.mxu0 0.0
        %826 = vmatprep.subr.mxu0 0.0
        %827 = vmatpush1.msra.mxu0 %v794
        %828 = vmatprep.subr.mxu0 0.0
        %829 = vmatpush2.msra.mxu0 0.0
        %830 = vmatprep.subr.mxu0 0.0
        %831 = vmatpush2.msra.mxu0 0.0
        %832 = vmatprep.subr.mxu0 0.0
        %833 = vmatpush2.msra.mxu0 0.0
        %834 = vmatprep.subr.mxu0 0.0
        %835 = vmatpush2.msra.mxu0 0.0
        %836 = vmatprep.subr.mxu0 0.0
        %837 = vmatpush2.msra.mxu0 0.0
        %838 = vmatprep.subr.mxu0 0.0
        %839 = vmatpush2.msra.mxu0 0.0
        %840 = vmatprep.subr.mxu0 0.0
        %841 = vmatpush2.msra.mxu0 0.0
        %842 = vmatprep.subr.mxu0 0.0
        %843 = vmatpush2.msra.mxu0 0.0
        %844 = vmatprep.subr.mxu0 0.0
        %845 = vmatpush2.msra.mxu0 0.0
        %846 = vmatprep.subr.mxu0 0.0
        %847 = vmatpush2.msra.mxu0 0.0
        %848 = vmatprep.subr.mxu0 0.0
        %849 = vmatpush2.msra.mxu0 0.0
        %850 = vmatprep.subr.mxu0 0.0
        %851 = vmatpush2.msra.mxu0 0.0
        %852 = vmatprep.subr.mxu0 0.0
        %853 = vmatpush2.msra.mxu0 0.0
        %854 = vmatprep.subr.mxu0 0.0
        %855 = vmatpush2.msra.mxu0 0.0
        %856 = vmatprep.subr.mxu0 0.0
        %857 = vmatpush2.msra.mxu0 0.0
        %858 = vmatprep.subr.mxu0 0.0
        %859 = vmatpush2.msra.mxu0 0.0
        %860 = vmatprep.mubr.f32.mxu0 0.0
        %861 = vmatmul.mubr.f32.gmra.mxu0 %v785
        %v862 = vpop.f32.mrf.mxu0
        %v863 = vadd.f32 %v771, %v862
        %v864 = vpop.f32.mrf.mxu0
        %865 = vmatprep.mubr.f32.mxu0 0.0
        %866 = vmatmul.mubr.f32.gmra.mxu0 %v788
        %v867 = vpop.f32.mrf.mxu0
        %v868 = vadd.f32 %v776, %v867
        %v869 = vpop.f32.mrf.mxu0
        %870 = vmatprep.mubr.f32.mxu0 0.0
        %871 = vmatmul.mubr.f32.gmra.mxu0 %v791
        %v872 = vpop.f32.mrf.mxu0
        %v873 = vadd.f32 %v781, %v872
        %v874 = vpop.f32.mrf.mxu0
        %875 = vdwg.mxu0
        %v877 = vsel %vm690, %v688, 0
        %v880 = vsel %vm690, %v687, 0
        %v883 = vsel %vm690, %v689, 0
        %v886 = vsel %vm700, %v672, 0
        %888 = vmatprep.subr.mxu0 0.0
        %889 = vmatpush1.msra.mxu0 0.0
        %890 = vmatprep.subr.mxu0 0.0
        %891 = vmatpush1.msra.mxu0 0.0
        %892 = vmatprep.subr.mxu0 0.0
        %893 = vmatpush1.msra.mxu0 0.0
        %894 = vmatprep.subr.mxu0 0.0
        %895 = vmatpush1.msra.mxu0 0.0
        %896 = vmatprep.subr.mxu0 0.0
        %897 = vmatpush1.msra.mxu0 0.0
        %898 = vmatprep.subr.mxu0 0.0
        %899 = vmatpush1.msra.mxu0 0.0
        %900 = vmatprep.subr.mxu0 0.0
        %901 = vmatpush1.msra.mxu0 0.0
        %902 = vmatprep.subr.mxu0 0.0
        %903 = vmatpush1.msra.mxu0 0.0
        %904 = vmatprep.subr.mxu0 0.0
        %905 = vmatpush1.msra.mxu0 0.0
        %906 = vmatprep.subr.mxu0 0.0
        %907 = vmatpush1.msra.mxu0 0.0
        %908 = vmatprep.subr.mxu0 0.0
        %909 = vmatpush1.msra.mxu0 0.0
        %910 = vmatprep.subr.mxu0 0.0
        %911 = vmatpush1.msra.mxu0 0.0
        %912 = vmatprep.subr.mxu0 0.0
        %913 = vmatpush1.msra.mxu0 0.0
        %914 = vmatprep.subr.mxu0 0.0
        %915 = vmatpush1.msra.mxu0 0.0
        %916 = vmatprep.subr.mxu0 0.0
        %917 = vmatpush1.msra.mxu0 0.0
        %918 = vmatprep.subr.mxu0 0.0
        %919 = vmatpush1.msra.mxu0 %v886
        %920 = vmatprep.subr.mxu0 0.0
        %921 = vmatpush2.msra.mxu0 0.0
        %922 = vmatprep.subr.mxu0 0.0
        %923 = vmatpush2.msra.mxu0 0.0
        %924 = vmatprep.subr.mxu0 0.0
        %925 = vmatpush2.msra.mxu0 0.0
        %926 = vmatprep.subr.mxu0 0.0
        %927 = vmatpush2.msra.mxu0 0.0
        %928 = vmatprep.subr.mxu0 0.0
        %929 = vmatpush2.msra.mxu0 0.0
        %930 = vmatprep.subr.mxu0 0.0
        %931 = vmatpush2.msra.mxu0 0.0
        %932 = vmatprep.subr.mxu0 0.0
        %933 = vmatpush2.msra.mxu0 0.0
        %934 = vmatprep.subr.mxu0 0.0
        %935 = vmatpush2.msra.mxu0 0.0
        %936 = vmatprep.subr.mxu0 0.0
        %937 = vmatpush2.msra.mxu0 0.0
        %938 = vmatprep.subr.mxu0 0.0
        %939 = vmatpush2.msra.mxu0 0.0
        %940 = vmatprep.subr.mxu0 0.0
        %941 = vmatpush2.msra.mxu0 0.0
        %942 = vmatprep.subr.mxu0 0.0
        %943 = vmatpush2.msra.mxu0 0.0
        %944 = vmatprep.subr.mxu0 0.0
        %945 = vmatpush2.msra.mxu0 0.0
        %946 = vmatprep.subr.mxu0 0.0
        %947 = vmatpush2.msra.mxu0 0.0
        %948 = vmatprep.subr.mxu0 0.0
        %949 = vmatpush2.msra.mxu0 0.0
        %950 = vmatprep.subr.mxu0 0.0
        %951 = vmatpush2.msra.mxu0 0.0
        %952 = vmatprep.mubr.f32.mxu0 0.0
        %953 = vmatmul.mubr.f32.gmra.mxu0 %v877
        %v954 = vpop.f32.mrf.mxu0
        %v955 = vadd.f32 0.0, %v954
        %v956 = vpop.f32.mrf.mxu0
        %957 = vmatprep.mubr.f32.mxu0 0.0
        %958 = vmatmul.mubr.f32.gmra.mxu0 %v880
        %v959 = vpop.f32.mrf.mxu0
        %v960 = vadd.f32 0.0, %v959
        %v961 = vpop.f32.mrf.mxu0
        %962 = vmatprep.mubr.f32.mxu0 0.0
        %963 = vmatmul.mubr.f32.gmra.mxu0 %v883
        %v964 = vpop.f32.mrf.mxu0
        %v965 = vadd.f32 0.0, %v964
        %v966 = vpop.f32.mrf.mxu0
        %967 = vdwg.mxu0
        %v968 = vadd.f32 %v863, %v955
        %v969 = vadd.f32 %v868, %v960
        %v970 = vadd.f32 %v873, %v965
        %v972 = vlaneseq
        %v973 = vshrl.u32 %v972, 7
        %v974 = vsub.s32 0, %v973
        %v975 = vrot.slane %v673, %v974
        %v977 = vadd.f32 %v968, %v975
        %v978 = vadd.f32 %v969, %v975
        %v979 = vadd.f32 %v970, %v975
        %981 = vset.pattern.permute.xlu0 0
        %982 = vperm.xlu0 %981, %v494
        %v983 = vpop.permute.xlu0 %982
        %986 = vset.pattern.permute.xlu0 0
        %987 = vperm.xlu0 %986, %v495
        %v988 = vpop.permute.xlu0 %987
        %991 = vset.pattern.permute.xlu0 0
        %992 = vperm.xlu0 %991, %v496
        %v993 = vpop.permute.xlu0 %992
        %v995 = vmul.f32 %v977, %v983
        %v996 = vmul.f32 %v978, %v988
        %v997 = vmul.f32 %v979, %v993
        %v998 = vmax.f32 %v995, 0.0
        %v999 = vmax.f32 %v996, 0.0
        %v1000 = vmax.f32 %v997, 0.0
        %v1001 = vld [vmem:[%s7] sm:$0xff]
        %v1002 = vld [vmem:[%s7 + $0x8] sm:$0xff]
        %v1003 = vld [vmem:[%s7 + $0x10] sm:$0xff]
        %v1004 = vld [vmem:[%s7 + $0x18] sm:$0xff]
        %s1005 = scalar_lea.vmem %s7, 32
        %v1006 = vld [vmem:[%s1005] sm:$0xff]
        %v1007 = vld [vmem:[%s1005 + $0x8] sm:$0xff]
        %v1008 = vld [vmem:[%s1005 + $0x10] sm:$0xff]
        %v1009 = vld [vmem:[%s1005 + $0x18] sm:$0xff]
        %s1010 = scalar_lea.vmem %s7, 64
        %v1011 = vld [vmem:[%s1010] sm:$0xff]
        %v1012 = vld [vmem:[%s1010 + $0x8] sm:$0xff]
        %v1013 = vld [vmem:[%s1010 + $0x10] sm:$0xff]
        %v1014 = vld [vmem:[%s1010 + $0x18] sm:$0xff]
        %v1015 = vrot.slane %v998, 7
        %v1016 = vrot.slane %v999, 7
        %v1017 = vrot.slane %v1000, 7
        %v1018 = vsel %vm679, %v1016, %v1017
        %v1019 = vsel %vm679, %v1015, %v1016
        %v1020 = vsel %vm679, %v1017, %v1015
        %v1021 = vrot.slane %v998, 1
        %v1022 = vrot.slane %v999, 1
        %v1023 = vrot.slane %v1000, 1
        %v1024 = vsel %vm686, %v1022, %v1023
        %v1025 = vsel %vm686, %v1021, %v1022
        %v1026 = vsel %vm686, %v1023, %v1021
        %vm1027 = vcmask 261120
        %v1029 = vsel %vm1027, %v998, 0
        %v1032 = vsel %vm1027, %v999, 0
        %v1035 = vsel %vm1027, %v1000, 0
        %1037 = vmatprep.subr.mxu0 0.0
        %1038 = vmatpush1.msra.mxu0 0.0
        %1039 = vmatprep.subr.mxu0 0.0
        %1040 = vmatpush1.msra.mxu0 0.0
        %1041 = vmatprep.subr.mxu0 0.0
        %1042 = vmatpush1.msra.mxu0 0.0
        %1043 = vmatprep.subr.mxu0 0.0
        %1044 = vmatpush1.msra.mxu0 0.0
        %1045 = vmatprep.subr.mxu0 0.0
        %1046 = vmatpush1.msra.mxu0 0.0
        %1047 = vmatprep.subr.mxu0 0.0
        %1048 = vmatpush1.msra.mxu0 0.0
        %1049 = vmatprep.subr.mxu0 0.0
        %1050 = vmatpush1.msra.mxu0 0.0
        %1051 = vmatprep.subr.mxu0 0.0
        %1052 = vmatpush1.msra.mxu0 0.0
        %1053 = vmatprep.subr.mxu0 0.0
        %1054 = vmatpush1.msra.mxu0 0.0
        %1055 = vmatprep.subr.mxu0 0.0
        %1056 = vmatpush1.msra.mxu0 0.0
        %1057 = vmatprep.subr.mxu0 0.0
        %1058 = vmatpush1.msra.mxu0 0.0
        %1059 = vmatprep.subr.mxu0 0.0
        %1060 = vmatpush1.msra.mxu0 0.0
        %1061 = vmatprep.subr.mxu0 0.0
        %1062 = vmatpush1.msra.mxu0 %v1009
        %1063 = vmatprep.subr.mxu0 0.0
        %1064 = vmatpush1.msra.mxu0 %v1008
        %1065 = vmatprep.subr.mxu0 0.0
        %1066 = vmatpush1.msra.mxu0 %v1007
        %1067 = vmatprep.subr.mxu0 0.0
        %1068 = vmatpush1.msra.mxu0 %v1006
        %1069 = vmatprep.subr.mxu0 0.0
        %1070 = vmatpush2.msra.mxu0 0.0
        %1071 = vmatprep.subr.mxu0 0.0
        %1072 = vmatpush2.msra.mxu0 0.0
        %1073 = vmatprep.subr.mxu0 0.0
        %1074 = vmatpush2.msra.mxu0 0.0
        %1075 = vmatprep.subr.mxu0 0.0
        %1076 = vmatpush2.msra.mxu0 0.0
        %1077 = vmatprep.subr.mxu0 0.0
        %1078 = vmatpush2.msra.mxu0 0.0
        %1079 = vmatprep.subr.mxu0 0.0
        %1080 = vmatpush2.msra.mxu0 0.0
        %1081 = vmatprep.subr.mxu0 0.0
        %1082 = vmatpush2.msra.mxu0 0.0
        %1083 = vmatprep.subr.mxu0 0.0
        %1084 = vmatpush2.msra.mxu0 0.0
        %1085 = vmatprep.subr.mxu0 0.0
        %1086 = vmatpush2.msra.mxu0 0.0
        %1087 = vmatprep.subr.mxu0 0.0
        %1088 = vmatpush2.msra.mxu0 0.0
        %1089 = vmatprep.subr.mxu0 0.0
        %1090 = vmatpush2.msra.mxu0 0.0
        %1091 = vmatprep.subr.mxu0 0.0
        %1092 = vmatpush2.msra.mxu0 0.0
        %1093 = vmatprep.subr.mxu0 0.0
        %1094 = vmatpush2.msra.mxu0 0.0
        %1095 = vmatprep.subr.mxu0 0.0
        %1096 = vmatpush2.msra.mxu0 0.0
        %1097 = vmatprep.subr.mxu0 0.0
        %1098 = vmatpush2.msra.mxu0 0.0
        %1099 = vmatprep.subr.mxu0 0.0
        %1100 = vmatpush2.msra.mxu0 0.0
        %1101 = vmatprep.mubr.f32.mxu0 0.0
        %1102 = vmatmul.mubr.f32.gmra.mxu0 %v1029
        %v1103 = vpop.f32.mrf.mxu0
        %v1104 = vadd.f32 0.0, %v1103
        %v1105 = vpop.f32.mrf.mxu0
        %1106 = vmatprep.mubr.f32.mxu0 0.0
        %1107 = vmatmul.mubr.f32.gmra.mxu0 %v1032
        %v1108 = vpop.f32.mrf.mxu0
        %v1109 = vadd.f32 0.0, %v1108
        %v1110 = vpop.f32.mrf.mxu0
        %1111 = vmatprep.mubr.f32.mxu0 0.0
        %1112 = vmatmul.mubr.f32.gmra.mxu0 %v1035
        %v1113 = vpop.f32.mrf.mxu0
        %v1114 = vadd.f32 0.0, %v1113
        %v1115 = vpop.f32.mrf.mxu0
        %1116 = vdwg.mxu0
        %v1118 = vsel %vm1027, %v1020, 0
        %v1121 = vsel %vm1027, %v1019, 0
        %v1124 = vsel %vm1027, %v1018, 0
        %1126 = vmatprep.subr.mxu0 0.0
        %1127 = vmatpush1.msra.mxu0 0.0
        %1128 = vmatprep.subr.mxu0 0.0
        %1129 = vmatpush1.msra.mxu0 0.0
        %1130 = vmatprep.subr.mxu0 0.0
        %1131 = vmatpush1.msra.mxu0 0.0
        %1132 = vmatprep.subr.mxu0 0.0
        %1133 = vmatpush1.msra.mxu0 0.0
        %1134 = vmatprep.subr.mxu0 0.0
        %1135 = vmatpush1.msra.mxu0 0.0
        %1136 = vmatprep.subr.mxu0 0.0
        %1137 = vmatpush1.msra.mxu0 0.0
        %1138 = vmatprep.subr.mxu0 0.0
        %1139 = vmatpush1.msra.mxu0 0.0
        %1140 = vmatprep.subr.mxu0 0.0
        %1141 = vmatpush1.msra.mxu0 0.0
        %1142 = vmatprep.subr.mxu0 0.0
        %1143 = vmatpush1.msra.mxu0 0.0
        %1144 = vmatprep.subr.mxu0 0.0
        %1145 = vmatpush1.msra.mxu0 0.0
        %1146 = vmatprep.subr.mxu0 0.0
        %1147 = vmatpush1.msra.mxu0 0.0
        %1148 = vmatprep.subr.mxu0 0.0
        %1149 = vmatpush1.msra.mxu0 0.0
        %1150 = vmatprep.subr.mxu0 0.0
        %1151 = vmatpush1.msra.mxu0 %v1004
        %1152 = vmatprep.subr.mxu0 0.0
        %1153 = vmatpush1.msra.mxu0 %v1003
        %1154 = vmatprep.subr.mxu0 0.0
        %1155 = vmatpush1.msra.mxu0 %v1002
        %1156 = vmatprep.subr.mxu0 0.0
        %1157 = vmatpush1.msra.mxu0 %v1001
        %1158 = vmatprep.subr.mxu0 0.0
        %1159 = vmatpush2.msra.mxu0 0.0
        %1160 = vmatprep.subr.mxu0 0.0
        %1161 = vmatpush2.msra.mxu0 0.0
        %1162 = vmatprep.subr.mxu0 0.0
        %1163 = vmatpush2.msra.mxu0 0.0
        %1164 = vmatprep.subr.mxu0 0.0
        %1165 = vmatpush2.msra.mxu0 0.0
        %1166 = vmatprep.subr.mxu0 0.0
        %1167 = vmatpush2.msra.mxu0 0.0
        %1168 = vmatprep.subr.mxu0 0.0
        %1169 = vmatpush2.msra.mxu0 0.0
        %1170 = vmatprep.subr.mxu0 0.0
        %1171 = vmatpush2.msra.mxu0 0.0
        %1172 = vmatprep.subr.mxu0 0.0
        %1173 = vmatpush2.msra.mxu0 0.0
        %1174 = vmatprep.subr.mxu0 0.0
        %1175 = vmatpush2.msra.mxu0 0.0
        %1176 = vmatprep.subr.mxu0 0.0
        %1177 = vmatpush2.msra.mxu0 0.0
        %1178 = vmatprep.subr.mxu0 0.0
        %1179 = vmatpush2.msra.mxu0 0.0
        %1180 = vmatprep.subr.mxu0 0.0
        %1181 = vmatpush2.msra.mxu0 0.0
        %1182 = vmatprep.subr.mxu0 0.0
        %1183 = vmatpush2.msra.mxu0 0.0
        %1184 = vmatprep.subr.mxu0 0.0
        %1185 = vmatpush2.msra.mxu0 0.0
        %1186 = vmatprep.subr.mxu0 0.0
        %1187 = vmatpush2.msra.mxu0 0.0
        %1188 = vmatprep.subr.mxu0 0.0
        %1189 = vmatpush2.msra.mxu0 0.0
        %1190 = vmatprep.mubr.f32.mxu0 0.0
        %1191 = vmatmul.mubr.f32.gmra.mxu0 %v1118
        %v1192 = vpop.f32.mrf.mxu0
        %v1193 = vadd.f32 %v1104, %v1192
        %v1194 = vpop.f32.mrf.mxu0
        %1195 = vmatprep.mubr.f32.mxu0 0.0
        %1196 = vmatmul.mubr.f32.gmra.mxu0 %v1121
        %v1197 = vpop.f32.mrf.mxu0
        %v1198 = vadd.f32 %v1109, %v1197
        %v1199 = vpop.f32.mrf.mxu0
        %1200 = vmatprep.mubr.f32.mxu0 0.0
        %1201 = vmatmul.mubr.f32.gmra.mxu0 %v1124
        %v1202 = vpop.f32.mrf.mxu0
        %v1203 = vadd.f32 %v1114, %v1202
        %v1204 = vpop.f32.mrf.mxu0
        %1205 = vdwg.mxu0
        %v1207 = vsel %vm1027, %v1025, 0
        %v1210 = vsel %vm1027, %v1024, 0
        %v1213 = vsel %vm1027, %v1026, 0
        %1215 = vmatprep.subr.mxu0 0.0
        %1216 = vmatpush1.msra.mxu0 0.0
        %1217 = vmatprep.subr.mxu0 0.0
        %1218 = vmatpush1.msra.mxu0 0.0
        %1219 = vmatprep.subr.mxu0 0.0
        %1220 = vmatpush1.msra.mxu0 0.0
        %1221 = vmatprep.subr.mxu0 0.0
        %1222 = vmatpush1.msra.mxu0 0.0
        %1223 = vmatprep.subr.mxu0 0.0
        %1224 = vmatpush1.msra.mxu0 0.0
        %1225 = vmatprep.subr.mxu0 0.0
        %1226 = vmatpush1.msra.mxu0 0.0
        %1227 = vmatprep.subr.mxu0 0.0
        %1228 = vmatpush1.msra.mxu0 0.0
        %1229 = vmatprep.subr.mxu0 0.0
        %1230 = vmatpush1.msra.mxu0 0.0
        %1231 = vmatprep.subr.mxu0 0.0
        %1232 = vmatpush1.msra.mxu0 0.0
        %1233 = vmatprep.subr.mxu0 0.0
        %1234 = vmatpush1.msra.mxu0 0.0
        %1235 = vmatprep.subr.mxu0 0.0
        %1236 = vmatpush1.msra.mxu0 0.0
        %1237 = vmatprep.subr.mxu0 0.0
        %1238 = vmatpush1.msra.mxu0 0.0
        %1239 = vmatprep.subr.mxu0 0.0
        %1240 = vmatpush1.msra.mxu0 %v1014
        %1241 = vmatprep.subr.mxu0 0.0
        %1242 = vmatpush1.msra.mxu0 %v1013
        %1243 = vmatprep.subr.mxu0 0.0
        %1244 = vmatpush1.msra.mxu0 %v1012
        %1245 = vmatprep.subr.mxu0 0.0
        %1246 = vmatpush1.msra.mxu0 %v1011
        %1247 = vmatprep.subr.mxu0 0.0
        %1248 = vmatpush2.msra.mxu0 0.0
        %1249 = vmatprep.subr.mxu0 0.0
        %1250 = vmatpush2.msra.mxu0 0.0
        %1251 = vmatprep.subr.mxu0 0.0
        %1252 = vmatpush2.msra.mxu0 0.0
        %1253 = vmatprep.subr.mxu0 0.0
        %1254 = vmatpush2.msra.mxu0 0.0
        %1255 = vmatprep.subr.mxu0 0.0
        %1256 = vmatpush2.msra.mxu0 0.0
        %1257 = vmatprep.subr.mxu0 0.0
        %1258 = vmatpush2.msra.mxu0 0.0
        %1259 = vmatprep.subr.mxu0 0.0
        %1260 = vmatpush2.msra.mxu0 0.0
        %1261 = vmatprep.subr.mxu0 0.0
        %1262 = vmatpush2.msra.mxu0 0.0
        %1263 = vmatprep.subr.mxu0 0.0
        %1264 = vmatpush2.msra.mxu0 0.0
        %1265 = vmatprep.subr.mxu0 0.0
        %1266 = vmatpush2.msra.mxu0 0.0
        %1267 = vmatprep.subr.mxu0 0.0
        %1268 = vmatpush2.msra.mxu0 0.0
        %1269 = vmatprep.subr.mxu0 0.0
        %1270 = vmatpush2.msra.mxu0 0.0
        %1271 = vmatprep.subr.mxu0 0.0
        %1272 = vmatpush2.msra.mxu0 0.0
        %1273 = vmatprep.subr.mxu0 0.0
        %1274 = vmatpush2.msra.mxu0 0.0
        %1275 = vmatprep.subr.mxu0 0.0
        %1276 = vmatpush2.msra.mxu0 0.0
        %1277 = vmatprep.subr.mxu0 0.0
        %1278 = vmatpush2.msra.mxu0 0.0
        %1279 = vmatprep.mubr.f32.mxu0 0.0
        %1280 = vmatmul.mubr.f32.gmra.mxu0 %v1207
        %v1281 = vpop.f32.mrf.mxu0
        %v1282 = vadd.f32 0.0, %v1281
        %v1283 = vpop.f32.mrf.mxu0
        %1284 = vmatprep.mubr.f32.mxu0 0.0
        %1285 = vmatmul.mubr.f32.gmra.mxu0 %v1210
        %v1286 = vpop.f32.mrf.mxu0
        %v1287 = vadd.f32 0.0, %v1286
        %v1288 = vpop.f32.mrf.mxu0
        %1289 = vmatprep.mubr.f32.mxu0 0.0
        %1290 = vmatmul.mubr.f32.gmra.mxu0 %v1213
        %v1291 = vpop.f32.mrf.mxu0
        %v1292 = vadd.f32 0.0, %v1291
        %v1293 = vpop.f32.mrf.mxu0
        %1294 = vdwg.mxu0
        %v1295 = vadd.f32 %v1193, %v1282
        %v1296 = vadd.f32 %v1198, %v1287
        %v1297 = vadd.f32 %v1203, %v1292
        %v1298 = vmul.f32 %v1295, %v983
        %v1299 = vmul.f32 %v1296, %v988
        %v1300 = vmul.f32 %v1297, %v993
        %v1301 = vmax.f32 %v1298, 0.0
        %v1302 = vmax.f32 %v1299, 0.0
        %v1303 = vmax.f32 %v1300, 0.0
        %v1304 = vld [vmem:[%s8] sm:$0xff]
        %v1306 = vsel %vm499, %v1301, 0
        %v1309 = vsel %vm499, %v1302, 0
        %v1312 = vsel %vm499, %v1303, 0
        %1314 = vmatprep.subr.mxu0 0.0
        %1315 = vmatpush1.msra.mxu0 0.0
        %1316 = vmatprep.subr.mxu0 0.0
        %1317 = vmatpush1.msra.mxu0 0.0
        %1318 = vmatprep.subr.mxu0 0.0
        %1319 = vmatpush1.msra.mxu0 0.0
        %1320 = vmatprep.subr.mxu0 0.0
        %1321 = vmatpush1.msra.mxu0 0.0
        %1322 = vmatprep.subr.mxu0 0.0
        %1323 = vmatpush1.msra.mxu0 0.0
        %1324 = vmatprep.subr.mxu0 0.0
        %1325 = vmatpush1.msra.mxu0 0.0
        %1326 = vmatprep.subr.mxu0 0.0
        %1327 = vmatpush1.msra.mxu0 0.0
        %1328 = vmatprep.subr.mxu0 0.0
        %1329 = vmatpush1.msra.mxu0 0.0
        %1330 = vmatprep.subr.mxu0 0.0
        %1331 = vmatpush1.msra.mxu0 0.0
        %1332 = vmatprep.subr.mxu0 0.0
        %1333 = vmatpush1.msra.mxu0 0.0
        %1334 = vmatprep.subr.mxu0 0.0
        %1335 = vmatpush1.msra.mxu0 0.0
        %1336 = vmatprep.subr.mxu0 0.0
        %1337 = vmatpush1.msra.mxu0 0.0
        %1338 = vmatprep.subr.mxu0 0.0
        %1339 = vmatpush1.msra.mxu0 0.0
        %1340 = vmatprep.subr.mxu0 0.0
        %1341 = vmatpush1.msra.mxu0 0.0
        %1342 = vmatprep.subr.mxu0 0.0
        %1343 = vmatpush1.msra.mxu0 0.0
        %1344 = vmatprep.subr.mxu0 0.0
        %1345 = vmatpush1.msra.mxu0 %v1304
        %1346 = vmatprep.subr.mxu0 0.0
        %1347 = vmatpush2.msra.mxu0 0.0
        %1348 = vmatprep.subr.mxu0 0.0
        %1349 = vmatpush2.msra.mxu0 0.0
        %1350 = vmatprep.subr.mxu0 0.0
        %1351 = vmatpush2.msra.mxu0 0.0
        %1352 = vmatprep.subr.mxu0 0.0
        %1353 = vmatpush2.msra.mxu0 0.0
        %1354 = vmatprep.subr.mxu0 0.0
        %1355 = vmatpush2.msra.mxu0 0.0
        %1356 = vmatprep.subr.mxu0 0.0
        %1357 = vmatpush2.msra.mxu0 0.0
        %1358 = vmatprep.subr.mxu0 0.0
        %1359 = vmatpush2.msra.mxu0 0.0
        %1360 = vmatprep.subr.mxu0 0.0
        %1361 = vmatpush2.msra.mxu0 0.0
        %1362 = vmatprep.subr.mxu0 0.0
        %1363 = vmatpush2.msra.mxu0 0.0
        %1364 = vmatprep.subr.mxu0 0.0
        %1365 = vmatpush2.msra.mxu0 0.0
        %1366 = vmatprep.subr.mxu0 0.0
        %1367 = vmatpush2.msra.mxu0 0.0
        %1368 = vmatprep.subr.mxu0 0.0
        %1369 = vmatpush2.msra.mxu0 0.0
        %1370 = vmatprep.subr.mxu0 0.0
        %1371 = vmatpush2.msra.mxu0 0.0
        %1372 = vmatprep.subr.mxu0 0.0
        %1373 = vmatpush2.msra.mxu0 0.0
        %1374 = vmatprep.subr.mxu0 0.0
        %1375 = vmatpush2.msra.mxu0 0.0
        %1376 = vmatprep.subr.mxu0 0.0
        %1377 = vmatpush2.msra.mxu0 0.0
        %1378 = vmatprep.mubr.f32.mxu0 0.0
        %1379 = vmatmul.mubr.f32.gmra.mxu0 %v1306
        %v1380 = vpop.f32.mrf.mxu0
        %v1381 = vadd.f32 0.0, %v1380
        %v1382 = vpop.f32.mrf.mxu0
        %1383 = vmatprep.mubr.f32.mxu0 0.0
        %1384 = vmatmul.mubr.f32.gmra.mxu0 %v1309
        %v1385 = vpop.f32.mrf.mxu0
        %v1386 = vadd.f32 0.0, %v1385
        %v1387 = vpop.f32.mrf.mxu0
        %1388 = vmatprep.mubr.f32.mxu0 0.0
        %1389 = vmatmul.mubr.f32.gmra.mxu0 %v1312
        %v1390 = vpop.f32.mrf.mxu0
        %v1391 = vadd.f32 0.0, %v1390
        %v1392 = vpop.f32.mrf.mxu0
        %1393 = vdwg.mxu0
        %v1394 = vadd.f32 %v995, %v1381
        %v1395 = vadd.f32 %v996, %v1386
        %v1396 = vadd.f32 %v997, %v1391
        %v1397 = vmax.f32 %v1394, 0.0
        %v1398 = vmax.f32 %v1395, 0.0
        %v1399 = vmax.f32 %v1396, 0.0
        %s1400 = scalar_lea.vmem %s7, 96
        %v1401 = vld [vmem:[%s1400] sm:$0xff]
        %v1402 = vld [vmem:[%s1400 + $0x8] sm:$0xff]
        %v1403 = vld [vmem:[%s1400 + $0x10] sm:$0xff]
        %v1404 = vld [vmem:[%s1400 + $0x18] sm:$0xff]
        %s1405 = scalar_lea.vmem %s7, 128
        %v1406 = vld [vmem:[%s1405] sm:$0xff]
        %v1407 = vld [vmem:[%s1405 + $0x8] sm:$0xff]
        %v1408 = vld [vmem:[%s1405 + $0x10] sm:$0xff]
        %v1409 = vld [vmem:[%s1405 + $0x18] sm:$0xff]
        %s1410 = scalar_lea.vmem %s7, 160
        %v1411 = vld [vmem:[%s1410] sm:$0xff]
        %v1412 = vld [vmem:[%s1410 + $0x8] sm:$0xff]
        %v1413 = vld [vmem:[%s1410 + $0x10] sm:$0xff]
        %v1414 = vld [vmem:[%s1410 + $0x18] sm:$0xff]
        %v1415 = vrot.slane %v1397, 7
        %v1416 = vrot.slane %v1398, 7
        %v1417 = vrot.slane %v1399, 7
        %v1418 = vsel %vm679, %v1416, %v1417
        %v1419 = vsel %vm679, %v1415, %v1416
        %v1420 = vsel %vm679, %v1417, %v1415
        %v1421 = vrot.slane %v1397, 1
        %v1422 = vrot.slane %v1398, 1
        %v1423 = vrot.slane %v1399, 1
        %v1424 = vsel %vm686, %v1422, %v1423
        %v1425 = vsel %vm686, %v1421, %v1422
        %v1426 = vsel %vm686, %v1423, %v1421
        %v1428 = vsel %vm1027, %v1397, 0
        %v1431 = vsel %vm1027, %v1398, 0
        %v1434 = vsel %vm1027, %v1399, 0
        %1436 = vmatprep.subr.mxu0 0.0
        %1437 = vmatpush1.msra.mxu0 0.0
        %1438 = vmatprep.subr.mxu0 0.0
        %1439 = vmatpush1.msra.mxu0 0.0
        %1440 = vmatprep.subr.mxu0 0.0
        %1441 = vmatpush1.msra.mxu0 0.0
        %1442 = vmatprep.subr.mxu0 0.0
        %1443 = vmatpush1.msra.mxu0 0.0
        %1444 = vmatprep.subr.mxu0 0.0
        %1445 = vmatpush1.msra.mxu0 0.0
        %1446 = vmatprep.subr.mxu0 0.0
        %1447 = vmatpush1.msra.mxu0 0.0
        %1448 = vmatprep.subr.mxu0 0.0
        %1449 = vmatpush1.msra.mxu0 0.0
        %1450 = vmatprep.subr.mxu0 0.0
        %1451 = vmatpush1.msra.mxu0 0.0
        %1452 = vmatprep.subr.mxu0 0.0
        %1453 = vmatpush1.msra.mxu0 0.0
        %1454 = vmatprep.subr.mxu0 0.0
        %1455 = vmatpush1.msra.mxu0 0.0
        %1456 = vmatprep.subr.mxu0 0.0
        %1457 = vmatpush1.msra.mxu0 0.0
        %1458 = vmatprep.subr.mxu0 0.0
        %1459 = vmatpush1.msra.mxu0 0.0
        %1460 = vmatprep.subr.mxu0 0.0
        %1461 = vmatpush1.msra.mxu0 %v1409
        %1462 = vmatprep.subr.mxu0 0.0
        %1463 = vmatpush1.msra.mxu0 %v1408
        %1464 = vmatprep.subr.mxu0 0.0
        %1465 = vmatpush1.msra.mxu0 %v1407
        %1466 = vmatprep.subr.mxu0 0.0
        %1467 = vmatpush1.msra.mxu0 %v1406
        %1468 = vmatprep.subr.mxu0 0.0
        %1469 = vmatpush2.msra.mxu0 0.0
        %1470 = vmatprep.subr.mxu0 0.0
        %1471 = vmatpush2.msra.mxu0 0.0
        %1472 = vmatprep.subr.mxu0 0.0
        %1473 = vmatpush2.msra.mxu0 0.0
        %1474 = vmatprep.subr.mxu0 0.0
        %1475 = vmatpush2.msra.mxu0 0.0
        %1476 = vmatprep.subr.mxu0 0.0
        %1477 = vmatpush2.msra.mxu0 0.0
        %1478 = vmatprep.subr.mxu0 0.0
        %1479 = vmatpush2.msra.mxu0 0.0
        %1480 = vmatprep.subr.mxu0 0.0
        %1481 = vmatpush2.msra.mxu0 0.0
        %1482 = vmatprep.subr.mxu0 0.0
        %1483 = vmatpush2.msra.mxu0 0.0
        %1484 = vmatprep.subr.mxu0 0.0
        %1485 = vmatpush2.msra.mxu0 0.0
        %1486 = vmatprep.subr.mxu0 0.0
        %1487 = vmatpush2.msra.mxu0 0.0
        %1488 = vmatprep.subr.mxu0 0.0
        %1489 = vmatpush2.msra.mxu0 0.0
        %1490 = vmatprep.subr.mxu0 0.0
        %1491 = vmatpush2.msra.mxu0 0.0
        %1492 = vmatprep.subr.mxu0 0.0
        %1493 = vmatpush2.msra.mxu0 0.0
        %1494 = vmatprep.subr.mxu0 0.0
        %1495 = vmatpush2.msra.mxu0 0.0
        %1496 = vmatprep.subr.mxu0 0.0
        %1497 = vmatpush2.msra.mxu0 0.0
        %1498 = vmatprep.subr.mxu0 0.0
        %1499 = vmatpush2.msra.mxu0 0.0
        %1500 = vmatprep.mubr.f32.mxu0 0.0
        %1501 = vmatmul.mubr.f32.gmra.mxu0 %v1428
        %v1502 = vpop.f32.mrf.mxu0
        %v1503 = vadd.f32 0.0, %v1502
        %v1504 = vpop.f32.mrf.mxu0
        %1505 = vmatprep.mubr.f32.mxu0 0.0
        %1506 = vmatmul.mubr.f32.gmra.mxu0 %v1431
        %v1507 = vpop.f32.mrf.mxu0
        %v1508 = vadd.f32 0.0, %v1507
        %v1509 = vpop.f32.mrf.mxu0
        %1510 = vmatprep.mubr.f32.mxu0 0.0
        %1511 = vmatmul.mubr.f32.gmra.mxu0 %v1434
        %v1512 = vpop.f32.mrf.mxu0
        %v1513 = vadd.f32 0.0, %v1512
        %v1514 = vpop.f32.mrf.mxu0
        %1515 = vdwg.mxu0
        %v1517 = vsel %vm1027, %v1420, 0
        %v1520 = vsel %vm1027, %v1419, 0
        %v1523 = vsel %vm1027, %v1418, 0
        %1525 = vmatprep.subr.mxu0 0.0
        %1526 = vmatpush1.msra.mxu0 0.0
        %1527 = vmatprep.subr.mxu0 0.0
        %1528 = vmatpush1.msra.mxu0 0.0
        %1529 = vmatprep.subr.mxu0 0.0
        %1530 = vmatpush1.msra.mxu0 0.0
        %1531 = vmatprep.subr.mxu0 0.0
        %1532 = vmatpush1.msra.mxu0 0.0
        %1533 = vmatprep.subr.mxu0 0.0
        %1534 = vmatpush1.msra.mxu0 0.0
        %1535 = vmatprep.subr.mxu0 0.0
        %1536 = vmatpush1.msra.mxu0 0.0
        %1537 = vmatprep.subr.mxu0 0.0
        %1538 = vmatpush1.msra.mxu0 0.0
        %1539 = vmatprep.subr.mxu0 0.0
        %1540 = vmatpush1.msra.mxu0 0.0
        %1541 = vmatprep.subr.mxu0 0.0
        %1542 = vmatpush1.msra.mxu0 0.0
        %1543 = vmatprep.subr.mxu0 0.0
        %1544 = vmatpush1.msra.mxu0 0.0
        %1545 = vmatprep.subr.mxu0 0.0
        %1546 = vmatpush1.msra.mxu0 0.0
        %1547 = vmatprep.subr.mxu0 0.0
        %1548 = vmatpush1.msra.mxu0 0.0
        %1549 = vmatprep.subr.mxu0 0.0
        %1550 = vmatpush1.msra.mxu0 %v1404
        %1551 = vmatprep.subr.mxu0 0.0
        %1552 = vmatpush1.msra.mxu0 %v1403
        %1553 = vmatprep.subr.mxu0 0.0
        %1554 = vmatpush1.msra.mxu0 %v1402
        %1555 = vmatprep.subr.mxu0 0.0
        %1556 = vmatpush1.msra.mxu0 %v1401
        %1557 = vmatprep.subr.mxu0 0.0
        %1558 = vmatpush2.msra.mxu0 0.0
        %1559 = vmatprep.subr.mxu0 0.0
        %1560 = vmatpush2.msra.mxu0 0.0
        %1561 = vmatprep.subr.mxu0 0.0
        %1562 = vmatpush2.msra.mxu0 0.0
        %1563 = vmatprep.subr.mxu0 0.0
        %1564 = vmatpush2.msra.mxu0 0.0
        %1565 = vmatprep.subr.mxu0 0.0
        %1566 = vmatpush2.msra.mxu0 0.0
        %1567 = vmatprep.subr.mxu0 0.0
        %1568 = vmatpush2.msra.mxu0 0.0
        %1569 = vmatprep.subr.mxu0 0.0
        %1570 = vmatpush2.msra.mxu0 0.0
        %1571 = vmatprep.subr.mxu0 0.0
        %1572 = vmatpush2.msra.mxu0 0.0
        %1573 = vmatprep.subr.mxu0 0.0
        %1574 = vmatpush2.msra.mxu0 0.0
        %1575 = vmatprep.subr.mxu0 0.0
        %1576 = vmatpush2.msra.mxu0 0.0
        %1577 = vmatprep.subr.mxu0 0.0
        %1578 = vmatpush2.msra.mxu0 0.0
        %1579 = vmatprep.subr.mxu0 0.0
        %1580 = vmatpush2.msra.mxu0 0.0
        %1581 = vmatprep.subr.mxu0 0.0
        %1582 = vmatpush2.msra.mxu0 0.0
        %1583 = vmatprep.subr.mxu0 0.0
        %1584 = vmatpush2.msra.mxu0 0.0
        %1585 = vmatprep.subr.mxu0 0.0
        %1586 = vmatpush2.msra.mxu0 0.0
        %1587 = vmatprep.subr.mxu0 0.0
        %1588 = vmatpush2.msra.mxu0 0.0
        %1589 = vmatprep.mubr.f32.mxu0 0.0
        %1590 = vmatmul.mubr.f32.gmra.mxu0 %v1517
        %v1591 = vpop.f32.mrf.mxu0
        %v1592 = vadd.f32 %v1503, %v1591
        %v1593 = vpop.f32.mrf.mxu0
        %1594 = vmatprep.mubr.f32.mxu0 0.0
        %1595 = vmatmul.mubr.f32.gmra.mxu0 %v1520
        %v1596 = vpop.f32.mrf.mxu0
        %v1597 = vadd.f32 %v1508, %v1596
        %v1598 = vpop.f32.mrf.mxu0
        %1599 = vmatprep.mubr.f32.mxu0 0.0
        %1600 = vmatmul.mubr.f32.gmra.mxu0 %v1523
        %v1601 = vpop.f32.mrf.mxu0
        %v1602 = vadd.f32 %v1513, %v1601
        %v1603 = vpop.f32.mrf.mxu0
        %1604 = vdwg.mxu0
        %v1606 = vsel %vm1027, %v1425, 0
        %v1609 = vsel %vm1027, %v1424, 0
        %v1612 = vsel %vm1027, %v1426, 0
        %1614 = vmatprep.subr.mxu0 0.0
        %1615 = vmatpush1.msra.mxu0 0.0
        %1616 = vmatprep.subr.mxu0 0.0
        %1617 = vmatpush1.msra.mxu0 0.0
        %1618 = vmatprep.subr.mxu0 0.0
        %1619 = vmatpush1.msra.mxu0 0.0
        %1620 = vmatprep.subr.mxu0 0.0
        %1621 = vmatpush1.msra.mxu0 0.0
        %1622 = vmatprep.subr.mxu0 0.0
        %1623 = vmatpush1.msra.mxu0 0.0
        %1624 = vmatprep.subr.mxu0 0.0
        %1625 = vmatpush1.msra.mxu0 0.0
        %1626 = vmatprep.subr.mxu0 0.0
        %1627 = vmatpush1.msra.mxu0 0.0
        %1628 = vmatprep.subr.mxu0 0.0
        %1629 = vmatpush1.msra.mxu0 0.0
        %1630 = vmatprep.subr.mxu0 0.0
        %1631 = vmatpush1.msra.mxu0 0.0
        %1632 = vmatprep.subr.mxu0 0.0
        %1633 = vmatpush1.msra.mxu0 0.0
        %1634 = vmatprep.subr.mxu0 0.0
        %1635 = vmatpush1.msra.mxu0 0.0
        %1636 = vmatprep.subr.mxu0 0.0
        %1637 = vmatpush1.msra.mxu0 0.0
        %1638 = vmatprep.subr.mxu0 0.0
        %1639 = vmatpush1.msra.mxu0 %v1414
        %1640 = vmatprep.subr.mxu0 0.0
        %1641 = vmatpush1.msra.mxu0 %v1413
        %1642 = vmatprep.subr.mxu0 0.0
        %1643 = vmatpush1.msra.mxu0 %v1412
        %1644 = vmatprep.subr.mxu0 0.0
        %1645 = vmatpush1.msra.mxu0 %v1411
        %1646 = vmatprep.subr.mxu0 0.0
        %1647 = vmatpush2.msra.mxu0 0.0
        %1648 = vmatprep.subr.mxu0 0.0
        %1649 = vmatpush2.msra.mxu0 0.0
        %1650 = vmatprep.subr.mxu0 0.0
        %1651 = vmatpush2.msra.mxu0 0.0
        %1652 = vmatprep.subr.mxu0 0.0
        %1653 = vmatpush2.msra.mxu0 0.0
        %1654 = vmatprep.subr.mxu0 0.0
        %1655 = vmatpush2.msra.mxu0 0.0
        %1656 = vmatprep.subr.mxu0 0.0
        %1657 = vmatpush2.msra.mxu0 0.0
        %1658 = vmatprep.subr.mxu0 0.0
        %1659 = vmatpush2.msra.mxu0 0.0
        %1660 = vmatprep.subr.mxu0 0.0
        %1661 = vmatpush2.msra.mxu0 0.0
        %1662 = vmatprep.subr.mxu0 0.0
        %1663 = vmatpush2.msra.mxu0 0.0
        %1664 = vmatprep.subr.mxu0 0.0
        %1665 = vmatpush2.msra.mxu0 0.0
        %1666 = vmatprep.subr.mxu0 0.0
        %1667 = vmatpush2.msra.mxu0 0.0
        %1668 = vmatprep.subr.mxu0 0.0
        %1669 = vmatpush2.msra.mxu0 0.0
        %1670 = vmatprep.subr.mxu0 0.0
        %1671 = vmatpush2.msra.mxu0 0.0
        %1672 = vmatprep.subr.mxu0 0.0
        %1673 = vmatpush2.msra.mxu0 0.0
        %1674 = vmatprep.subr.mxu0 0.0
        %1675 = vmatpush2.msra.mxu0 0.0
        %1676 = vmatprep.subr.mxu0 0.0
        %1677 = vmatpush2.msra.mxu0 0.0
        %1678 = vmatprep.mubr.f32.mxu0 0.0
        %1679 = vmatmul.mubr.f32.gmra.mxu0 %v1606
        %v1680 = vpop.f32.mrf.mxu0
        %v1681 = vadd.f32 0.0, %v1680
        %v1682 = vpop.f32.mrf.mxu0
        %1683 = vmatprep.mubr.f32.mxu0 0.0
        %1684 = vmatmul.mubr.f32.gmra.mxu0 %v1609
        %v1685 = vpop.f32.mrf.mxu0
        %v1686 = vadd.f32 0.0, %v1685
        %v1687 = vpop.f32.mrf.mxu0
        %1688 = vmatprep.mubr.f32.mxu0 0.0
        %1689 = vmatmul.mubr.f32.gmra.mxu0 %v1612
        %v1690 = vpop.f32.mrf.mxu0
        %v1691 = vadd.f32 0.0, %v1690
        %v1692 = vpop.f32.mrf.mxu0
        %1693 = vdwg.mxu0
        %v1694 = vadd.f32 %v1592, %v1681
        %v1695 = vadd.f32 %v1597, %v1686
        %v1696 = vadd.f32 %v1602, %v1691
        %v1697 = vmul.f32 %v1694, %v983
        %v1698 = vmul.f32 %v1695, %v988
        %v1699 = vmul.f32 %v1696, %v993
        %v1700 = vmax.f32 %v1697, 0.0
        %v1701 = vmax.f32 %v1698, 0.0
        %v1702 = vmax.f32 %v1699, 0.0
        %s1703 = scalar_lea.vmem %s8, 8
        %v1704 = vld [vmem:[%s1703] sm:$0xff]
        %v1706 = vsel %vm499, %v1700, 0
        %v1709 = vsel %vm499, %v1701, 0
        %v1712 = vsel %vm499, %v1702, 0
        %1714 = vmatprep.subr.mxu0 0.0
        %1715 = vmatpush1.msra.mxu0 0.0
        %1716 = vmatprep.subr.mxu0 0.0
        %1717 = vmatpush1.msra.mxu0 0.0
        %1718 = vmatprep.subr.mxu0 0.0
        %1719 = vmatpush1.msra.mxu0 0.0
        %1720 = vmatprep.subr.mxu0 0.0
        %1721 = vmatpush1.msra.mxu0 0.0
        %1722 = vmatprep.subr.mxu0 0.0
        %1723 = vmatpush1.msra.mxu0 0.0
        %1724 = vmatprep.subr.mxu0 0.0
        %1725 = vmatpush1.msra.mxu0 0.0
        %1726 = vmatprep.subr.mxu0 0.0
        %1727 = vmatpush1.msra.mxu0 0.0
        %1728 = vmatprep.subr.mxu0 0.0
        %1729 = vmatpush1.msra.mxu0 0.0
        %1730 = vmatprep.subr.mxu0 0.0
        %1731 = vmatpush1.msra.mxu0 0.0
        %1732 = vmatprep.subr.mxu0 0.0
        %1733 = vmatpush1.msra.mxu0 0.0
        %1734 = vmatprep.subr.mxu0 0.0
        %1735 = vmatpush1.msra.mxu0 0.0
        %1736 = vmatprep.subr.mxu0 0.0
        %1737 = vmatpush1.msra.mxu0 0.0
        %1738 = vmatprep.subr.mxu0 0.0
        %1739 = vmatpush1.msra.mxu0 0.0
        %1740 = vmatprep.subr.mxu0 0.0
        %1741 = vmatpush1.msra.mxu0 0.0
        %1742 = vmatprep.subr.mxu0 0.0
        %1743 = vmatpush1.msra.mxu0 0.0
        %1744 = vmatprep.subr.mxu0 0.0
        %1745 = vmatpush1.msra.mxu0 %v1704
        %1746 = vmatprep.subr.mxu0 0.0
        %1747 = vmatpush2.msra.mxu0 0.0
        %1748 = vmatprep.subr.mxu0 0.0
        %1749 = vmatpush2.msra.mxu0 0.0
        %1750 = vmatprep.subr.mxu0 0.0
        %1751 = vmatpush2.msra.mxu0 0.0
        %1752 = vmatprep.subr.mxu0 0.0
        %1753 = vmatpush2.msra.mxu0 0.0
        %1754 = vmatprep.subr.mxu0 0.0
        %1755 = vmatpush2.msra.mxu0 0.0
        %1756 = vmatprep.subr.mxu0 0.0
        %1757 = vmatpush2.msra.mxu0 0.0
        %1758 = vmatprep.subr.mxu0 0.0
        %1759 = vmatpush2.msra.mxu0 0.0
        %1760 = vmatprep.subr.mxu0 0.0
        %1761 = vmatpush2.msra.mxu0 0.0
        %1762 = vmatprep.subr.mxu0 0.0
        %1763 = vmatpush2.msra.mxu0 0.0
        %1764 = vmatprep.subr.mxu0 0.0
        %1765 = vmatpush2.msra.mxu0 0.0
        %1766 = vmatprep.subr.mxu0 0.0
        %1767 = vmatpush2.msra.mxu0 0.0
        %1768 = vmatprep.subr.mxu0 0.0
        %1769 = vmatpush2.msra.mxu0 0.0
        %1770 = vmatprep.subr.mxu0 0.0
        %1771 = vmatpush2.msra.mxu0 0.0
        %1772 = vmatprep.subr.mxu0 0.0
        %1773 = vmatpush2.msra.mxu0 0.0
        %1774 = vmatprep.subr.mxu0 0.0
        %1775 = vmatpush2.msra.mxu0 0.0
        %1776 = vmatprep.subr.mxu0 0.0
        %1777 = vmatpush2.msra.mxu0 0.0
        %1778 = vmatprep.mubr.f32.mxu0 0.0
        %1779 = vmatmul.mubr.f32.gmra.mxu0 %v1706
        %v1780 = vpop.f32.mrf.mxu0
        %v1781 = vadd.f32 0.0, %v1780
        %v1782 = vpop.f32.mrf.mxu0
        %1783 = vmatprep.mubr.f32.mxu0 0.0
        %1784 = vmatmul.mubr.f32.gmra.mxu0 %v1709
        %v1785 = vpop.f32.mrf.mxu0
        %v1786 = vadd.f32 0.0, %v1785
        %v1787 = vpop.f32.mrf.mxu0
        %1788 = vmatprep.mubr.f32.mxu0 0.0
        %1789 = vmatmul.mubr.f32.gmra.mxu0 %v1712
        %v1790 = vpop.f32.mrf.mxu0
        %v1791 = vadd.f32 0.0, %v1790
        %v1792 = vpop.f32.mrf.mxu0
        %1793 = vdwg.mxu0
        %v1794 = vadd.f32 %v1394, %v1781
        %v1795 = vadd.f32 %v1395, %v1786
        %v1796 = vadd.f32 %v1396, %v1791
        %v1797 = vmax.f32 %v1794, 0.0
        %v1798 = vmax.f32 %v1795, 0.0
        %v1799 = vmax.f32 %v1796, 0.0
        %v1800 = vld [vmem:[%s9] sm:$0xff]
        %v1801 = vld [vmem:[%s9 + $0x8] sm:$0xff]
        %v1802 = vld [vmem:[%s9 + $0x10] sm:$0xff]
        %v1803 = vld [vmem:[%s9 + $0x18] sm:$0xff]
        %s1804 = scalar_lea.vmem %s9, 32
        %v1805 = vld [vmem:[%s1804] sm:$0xff]
        %v1806 = vld [vmem:[%s1804 + $0x8] sm:$0xff]
        %v1807 = vld [vmem:[%s1804 + $0x10] sm:$0xff]
        %v1808 = vld [vmem:[%s1804 + $0x18] sm:$0xff]
        %s1809 = scalar_lea.vmem %s9, 64
        %v1810 = vld [vmem:[%s1809] sm:$0xff]
        %v1811 = vld [vmem:[%s1809 + $0x8] sm:$0xff]
        %v1812 = vld [vmem:[%s1809 + $0x10] sm:$0xff]
        %v1813 = vld [vmem:[%s1809 + $0x18] sm:$0xff]
        %v1814 = vld [vmem:[%s10] sm:$0x1]
        %v1815 = vrot.slane %v1797, 7
        %v1816 = vrot.slane %v1798, 7
        %v1817 = vrot.slane %v1799, 7
        %v1818 = vsel %vm679, %v1816, %v1817
        %v1819 = vsel %vm679, %v1815, %v1816
        %v1820 = vsel %vm679, %v1817, %v1815
        %v1821 = vrot.slane %v1797, 1
        %v1822 = vrot.slane %v1798, 1
        %v1823 = vrot.slane %v1799, 1
        %v1824 = vsel %vm686, %v1822, %v1823
        %v1825 = vsel %vm686, %v1821, %v1822
        %v1826 = vsel %vm686, %v1823, %v1821
        %v1828 = vsel %vm1027, %v1797, 0
        %v1831 = vsel %vm1027, %v1798, 0
        %v1834 = vsel %vm1027, %v1799, 0
        %1836 = vmatprep.subr.mxu0 0.0
        %1837 = vmatpush1.msra.mxu0 0.0
        %1838 = vmatprep.subr.mxu0 0.0
        %1839 = vmatpush1.msra.mxu0 0.0
        %1840 = vmatprep.subr.mxu0 0.0
        %1841 = vmatpush1.msra.mxu0 0.0
        %1842 = vmatprep.subr.mxu0 0.0
        %1843 = vmatpush1.msra.mxu0 0.0
        %1844 = vmatprep.subr.mxu0 0.0
        %1845 = vmatpush1.msra.mxu0 0.0
        %1846 = vmatprep.subr.mxu0 0.0
        %1847 = vmatpush1.msra.mxu0 0.0
        %1848 = vmatprep.subr.mxu0 0.0
        %1849 = vmatpush1.msra.mxu0 0.0
        %1850 = vmatprep.subr.mxu0 0.0
        %1851 = vmatpush1.msra.mxu0 0.0
        %1852 = vmatprep.subr.mxu0 0.0
        %1853 = vmatpush1.msra.mxu0 0.0
        %1854 = vmatprep.subr.mxu0 0.0
        %1855 = vmatpush1.msra.mxu0 0.0
        %1856 = vmatprep.subr.mxu0 0.0
        %1857 = vmatpush1.msra.mxu0 0.0
        %1858 = vmatprep.subr.mxu0 0.0
        %1859 = vmatpush1.msra.mxu0 0.0
        %1860 = vmatprep.subr.mxu0 0.0
        %1861 = vmatpush1.msra.mxu0 %v1808
        %1862 = vmatprep.subr.mxu0 0.0
        %1863 = vmatpush1.msra.mxu0 %v1807
        %1864 = vmatprep.subr.mxu0 0.0
        %1865 = vmatpush1.msra.mxu0 %v1806
        %1866 = vmatprep.subr.mxu0 0.0
        %1867 = vmatpush1.msra.mxu0 %v1805
        %1868 = vmatprep.subr.mxu0 0.0
        %1869 = vmatpush2.msra.mxu0 0.0
        %1870 = vmatprep.subr.mxu0 0.0
        %1871 = vmatpush2.msra.mxu0 0.0
        %1872 = vmatprep.subr.mxu0 0.0
        %1873 = vmatpush2.msra.mxu0 0.0
        %1874 = vmatprep.subr.mxu0 0.0
        %1875 = vmatpush2.msra.mxu0 0.0
        %1876 = vmatprep.subr.mxu0 0.0
        %1877 = vmatpush2.msra.mxu0 0.0
        %1878 = vmatprep.subr.mxu0 0.0
        %1879 = vmatpush2.msra.mxu0 0.0
        %1880 = vmatprep.subr.mxu0 0.0
        %1881 = vmatpush2.msra.mxu0 0.0
        %1882 = vmatprep.subr.mxu0 0.0
        %1883 = vmatpush2.msra.mxu0 0.0
        %1884 = vmatprep.subr.mxu0 0.0
        %1885 = vmatpush2.msra.mxu0 0.0
        %1886 = vmatprep.subr.mxu0 0.0
        %1887 = vmatpush2.msra.mxu0 0.0
        %1888 = vmatprep.subr.mxu0 0.0
        %1889 = vmatpush2.msra.mxu0 0.0
        %1890 = vmatprep.subr.mxu0 0.0
        %1891 = vmatpush2.msra.mxu0 0.0
        %1892 = vmatprep.subr.mxu0 0.0
        %1893 = vmatpush2.msra.mxu0 0.0
        %1894 = vmatprep.subr.mxu0 0.0
        %1895 = vmatpush2.msra.mxu0 0.0
        %1896 = vmatprep.subr.mxu0 0.0
        %1897 = vmatpush2.msra.mxu0 0.0
        %1898 = vmatprep.subr.mxu0 0.0
        %1899 = vmatpush2.msra.mxu0 0.0
        %1900 = vmatprep.mubr.f32.mxu0 0.0
        %1901 = vmatmul.mubr.f32.gmra.mxu0 %v1828
        %v1902 = vpop.f32.mrf.mxu0
        %v1903 = vadd.f32 0.0, %v1902
        %v1904 = vpop.f32.mrf.mxu0
        %1905 = vmatprep.mubr.f32.mxu0 0.0
        %1906 = vmatmul.mubr.f32.gmra.mxu0 %v1831
        %v1907 = vpop.f32.mrf.mxu0
        %v1908 = vadd.f32 0.0, %v1907
        %v1909 = vpop.f32.mrf.mxu0
        %1910 = vmatprep.mubr.f32.mxu0 0.0
        %1911 = vmatmul.mubr.f32.gmra.mxu0 %v1834
        %v1912 = vpop.f32.mrf.mxu0
        %v1913 = vadd.f32 0.0, %v1912
        %v1914 = vpop.f32.mrf.mxu0
        %1915 = vdwg.mxu0
        %v1917 = vsel %vm1027, %v1820, 0
        %v1920 = vsel %vm1027, %v1819, 0
        %v1923 = vsel %vm1027, %v1818, 0
        %1925 = vmatprep.subr.mxu0 0.0
        %1926 = vmatpush1.msra.mxu0 0.0
        %1927 = vmatprep.subr.mxu0 0.0
        %1928 = vmatpush1.msra.mxu0 0.0
        %1929 = vmatprep.subr.mxu0 0.0
        %1930 = vmatpush1.msra.mxu0 0.0
        %1931 = vmatprep.subr.mxu0 0.0
        %1932 = vmatpush1.msra.mxu0 0.0
        %1933 = vmatprep.subr.mxu0 0.0
        %1934 = vmatpush1.msra.mxu0 0.0
        %1935 = vmatprep.subr.mxu0 0.0
        %1936 = vmatpush1.msra.mxu0 0.0
        %1937 = vmatprep.subr.mxu0 0.0
        %1938 = vmatpush1.msra.mxu0 0.0
        %1939 = vmatprep.subr.mxu0 0.0
        %1940 = vmatpush1.msra.mxu0 0.0
        %1941 = vmatprep.subr.mxu0 0.0
        %1942 = vmatpush1.msra.mxu0 0.0
        %1943 = vmatprep.subr.mxu0 0.0
        %1944 = vmatpush1.msra.mxu0 0.0
        %1945 = vmatprep.subr.mxu0 0.0
        %1946 = vmatpush1.msra.mxu0 0.0
        %1947 = vmatprep.subr.mxu0 0.0
        %1948 = vmatpush1.msra.mxu0 0.0
        %1949 = vmatprep.subr.mxu0 0.0
        %1950 = vmatpush1.msra.mxu0 %v1803
        %1951 = vmatprep.subr.mxu0 0.0
        %1952 = vmatpush1.msra.mxu0 %v1802
        %1953 = vmatprep.subr.mxu0 0.0
        %1954 = vmatpush1.msra.mxu0 %v1801
        %1955 = vmatprep.subr.mxu0 0.0
        %1956 = vmatpush1.msra.mxu0 %v1800
        %1957 = vmatprep.subr.mxu0 0.0
        %1958 = vmatpush2.msra.mxu0 0.0
        %1959 = vmatprep.subr.mxu0 0.0
        %1960 = vmatpush2.msra.mxu0 0.0
        %1961 = vmatprep.subr.mxu0 0.0
        %1962 = vmatpush2.msra.mxu0 0.0
        %1963 = vmatprep.subr.mxu0 0.0
        %1964 = vmatpush2.msra.mxu0 0.0
        %1965 = vmatprep.subr.mxu0 0.0
        %1966 = vmatpush2.msra.mxu0 0.0
        %1967 = vmatprep.subr.mxu0 0.0
        %1968 = vmatpush2.msra.mxu0 0.0
        %1969 = vmatprep.subr.mxu0 0.0
        %1970 = vmatpush2.msra.mxu0 0.0
        %1971 = vmatprep.subr.mxu0 0.0
        %1972 = vmatpush2.msra.mxu0 0.0
        %1973 = vmatprep.subr.mxu0 0.0
        %1974 = vmatpush2.msra.mxu0 0.0
        %1975 = vmatprep.subr.mxu0 0.0
        %1976 = vmatpush2.msra.mxu0 0.0
        %1977 = vmatprep.subr.mxu0 0.0
        %1978 = vmatpush2.msra.mxu0 0.0
        %1979 = vmatprep.subr.mxu0 0.0
        %1980 = vmatpush2.msra.mxu0 0.0
        %1981 = vmatprep.subr.mxu0 0.0
        %1982 = vmatpush2.msra.mxu0 0.0
        %1983 = vmatprep.subr.mxu0 0.0
        %1984 = vmatpush2.msra.mxu0 0.0
        %1985 = vmatprep.subr.mxu0 0.0
        %1986 = vmatpush2.msra.mxu0 0.0
        %1987 = vmatprep.subr.mxu0 0.0
        %1988 = vmatpush2.msra.mxu0 0.0
        %1989 = vmatprep.mubr.f32.mxu0 0.0
        %1990 = vmatmul.mubr.f32.gmra.mxu0 %v1917
        %v1991 = vpop.f32.mrf.mxu0
        %v1992 = vadd.f32 %v1903, %v1991
        %v1993 = vpop.f32.mrf.mxu0
        %1994 = vmatprep.mubr.f32.mxu0 0.0
        %1995 = vmatmul.mubr.f32.gmra.mxu0 %v1920
        %v1996 = vpop.f32.mrf.mxu0
        %v1997 = vadd.f32 %v1908, %v1996
        %v1998 = vpop.f32.mrf.mxu0
        %1999 = vmatprep.mubr.f32.mxu0 0.0
        %2000 = vmatmul.mubr.f32.gmra.mxu0 %v1923
        %v2001 = vpop.f32.mrf.mxu0
        %v2002 = vadd.f32 %v1913, %v2001
        %v2003 = vpop.f32.mrf.mxu0
        %2004 = vdwg.mxu0
        %v2006 = vsel %vm1027, %v1825, 0
        %v2009 = vsel %vm1027, %v1824, 0
        %v2012 = vsel %vm1027, %v1826, 0
        %2014 = vmatprep.subr.mxu0 0.0
        %2015 = vmatpush1.msra.mxu0 0.0
        %2016 = vmatprep.subr.mxu0 0.0
        %2017 = vmatpush1.msra.mxu0 0.0
        %2018 = vmatprep.subr.mxu0 0.0
        %2019 = vmatpush1.msra.mxu0 0.0
        %2020 = vmatprep.subr.mxu0 0.0
        %2021 = vmatpush1.msra.mxu0 0.0
        %2022 = vmatprep.subr.mxu0 0.0
        %2023 = vmatpush1.msra.mxu0 0.0
        %2024 = vmatprep.subr.mxu0 0.0
        %2025 = vmatpush1.msra.mxu0 0.0
        %2026 = vmatprep.subr.mxu0 0.0
        %2027 = vmatpush1.msra.mxu0 0.0
        %2028 = vmatprep.subr.mxu0 0.0
        %2029 = vmatpush1.msra.mxu0 0.0
        %2030 = vmatprep.subr.mxu0 0.0
        %2031 = vmatpush1.msra.mxu0 0.0
        %2032 = vmatprep.subr.mxu0 0.0
        %2033 = vmatpush1.msra.mxu0 0.0
        %2034 = vmatprep.subr.mxu0 0.0
        %2035 = vmatpush1.msra.mxu0 0.0
        %2036 = vmatprep.subr.mxu0 0.0
        %2037 = vmatpush1.msra.mxu0 0.0
        %2038 = vmatprep.subr.mxu0 0.0
        %2039 = vmatpush1.msra.mxu0 %v1813
        %2040 = vmatprep.subr.mxu0 0.0
        %2041 = vmatpush1.msra.mxu0 %v1812
        %2042 = vmatprep.subr.mxu0 0.0
        %2043 = vmatpush1.msra.mxu0 %v1811
        %2044 = vmatprep.subr.mxu0 0.0
        %2045 = vmatpush1.msra.mxu0 %v1810
        %2046 = vmatprep.subr.mxu0 0.0
        %2047 = vmatpush2.msra.mxu0 0.0
        %2048 = vmatprep.subr.mxu0 0.0
        %2049 = vmatpush2.msra.mxu0 0.0
        %2050 = vmatprep.subr.mxu0 0.0
        %2051 = vmatpush2.msra.mxu0 0.0
        %2052 = vmatprep.subr.mxu0 0.0
        %2053 = vmatpush2.msra.mxu0 0.0
        %2054 = vmatprep.subr.mxu0 0.0
        %2055 = vmatpush2.msra.mxu0 0.0
        %2056 = vmatprep.subr.mxu0 0.0
        %2057 = vmatpush2.msra.mxu0 0.0
        %2058 = vmatprep.subr.mxu0 0.0
        %2059 = vmatpush2.msra.mxu0 0.0
        %2060 = vmatprep.subr.mxu0 0.0
        %2061 = vmatpush2.msra.mxu0 0.0
        %2062 = vmatprep.subr.mxu0 0.0
        %2063 = vmatpush2.msra.mxu0 0.0
        %2064 = vmatprep.subr.mxu0 0.0
        %2065 = vmatpush2.msra.mxu0 0.0
        %2066 = vmatprep.subr.mxu0 0.0
        %2067 = vmatpush2.msra.mxu0 0.0
        %2068 = vmatprep.subr.mxu0 0.0
        %2069 = vmatpush2.msra.mxu0 0.0
        %2070 = vmatprep.subr.mxu0 0.0
        %2071 = vmatpush2.msra.mxu0 0.0
        %2072 = vmatprep.subr.mxu0 0.0
        %2073 = vmatpush2.msra.mxu0 0.0
        %2074 = vmatprep.subr.mxu0 0.0
        %2075 = vmatpush2.msra.mxu0 0.0
        %2076 = vmatprep.subr.mxu0 0.0
        %2077 = vmatpush2.msra.mxu0 0.0
        %2078 = vmatprep.mubr.f32.mxu0 0.0
        %2079 = vmatmul.mubr.f32.gmra.mxu0 %v2006
        %v2080 = vpop.f32.mrf.mxu0
        %v2081 = vadd.f32 0.0, %v2080
        %v2082 = vpop.f32.mrf.mxu0
        %2083 = vmatprep.mubr.f32.mxu0 0.0
        %2084 = vmatmul.mubr.f32.gmra.mxu0 %v2009
        %v2085 = vpop.f32.mrf.mxu0
        %v2086 = vadd.f32 0.0, %v2085
        %v2087 = vpop.f32.mrf.mxu0
        %2088 = vmatprep.mubr.f32.mxu0 0.0
        %2089 = vmatmul.mubr.f32.gmra.mxu0 %v2012
        %v2090 = vpop.f32.mrf.mxu0
        %v2091 = vadd.f32 0.0, %v2090
        %v2092 = vpop.f32.mrf.mxu0
        %2093 = vdwg.mxu0
        %v2094 = vadd.f32 %v1992, %v2081
        %v2095 = vadd.f32 %v1997, %v2086
        %v2096 = vadd.f32 %v2002, %v2091
        %v2098 = vlaneseq
        %v2099 = vshrl.u32 %v2098, 7
        %v2100 = vsub.s32 0, %v2099
        %v2101 = vrot.slane %v1814, %v2100
        %v2103 = vadd.f32 %v2094, %v2101
        %v2104 = vadd.f32 %v2095, %v2101
        %v2105 = vadd.f32 %v2096, %v2101
        %v2106 = vmul.f32 %v2103, %v983
        %v2107 = vmul.f32 %v2104, %v988
        %v2108 = vmul.f32 %v2105, %v993
        %v2109 = vmax.f32 %v2106, 0.0
        %v2110 = vmax.f32 %v2107, 0.0
        %v2111 = vmax.f32 %v2108, 0.0
        %v2112 = vld [vmem:[%s11] sm:$0xff]
        %v2113 = vld [vmem:[%s11 + $0x8] sm:$0xff]
        %v2114 = vld [vmem:[%s11 + $0x10] sm:$0xff]
        %v2115 = vld [vmem:[%s11 + $0x18] sm:$0xff]
        %s2116 = scalar_lea.vmem %s11, 32
        %v2117 = vld [vmem:[%s2116] sm:$0xff]
        %v2118 = vld [vmem:[%s2116 + $0x8] sm:$0xff]
        %v2119 = vld [vmem:[%s2116 + $0x10] sm:$0xff]
        %v2120 = vld [vmem:[%s2116 + $0x18] sm:$0xff]
        %s2121 = scalar_lea.vmem %s11, 64
        %v2122 = vld [vmem:[%s2121] sm:$0xff]
        %v2123 = vld [vmem:[%s2121 + $0x8] sm:$0xff]
        %v2124 = vld [vmem:[%s2121 + $0x10] sm:$0xff]
        %v2125 = vld [vmem:[%s2121 + $0x18] sm:$0xff]
        %v2126 = vld [vmem:[%s12] sm:$0x1]
        %v2127 = vrot.slane %v2109, 7
        %v2128 = vrot.slane %v2110, 7
        %v2129 = vrot.slane %v2111, 7
        %v2130 = vsel %vm679, %v2128, %v2129
        %v2131 = vsel %vm679, %v2127, %v2128
        %v2132 = vsel %vm679, %v2129, %v2127
        %v2133 = vrot.slane %v2109, 1
        %v2134 = vrot.slane %v2110, 1
        %v2135 = vrot.slane %v2111, 1
        %v2136 = vsel %vm686, %v2134, %v2135
        %v2137 = vsel %vm686, %v2133, %v2134
        %v2138 = vsel %vm686, %v2135, %v2133
        %v2140 = vsel %vm1027, %v2109, 0
        %v2143 = vsel %vm1027, %v2110, 0
        %v2146 = vsel %vm1027, %v2111, 0
        %2148 = vmatprep.subr.mxu0 0.0
        %2149 = vmatpush1.msra.mxu0 0.0
        %2150 = vmatprep.subr.mxu0 0.0
        %2151 = vmatpush1.msra.mxu0 0.0
        %2152 = vmatprep.subr.mxu0 0.0
        %2153 = vmatpush1.msra.mxu0 0.0
        %2154 = vmatprep.subr.mxu0 0.0
        %2155 = vmatpush1.msra.mxu0 0.0
        %2156 = vmatprep.subr.mxu0 0.0
        %2157 = vmatpush1.msra.mxu0 0.0
        %2158 = vmatprep.subr.mxu0 0.0
        %2159 = vmatpush1.msra.mxu0 0.0
        %2160 = vmatprep.subr.mxu0 0.0
        %2161 = vmatpush1.msra.mxu0 0.0
        %2162 = vmatprep.subr.mxu0 0.0
        %2163 = vmatpush1.msra.mxu0 0.0
        %2164 = vmatprep.subr.mxu0 0.0
        %2165 = vmatpush1.msra.mxu0 0.0
        %2166 = vmatprep.subr.mxu0 0.0
        %2167 = vmatpush1.msra.mxu0 0.0
        %2168 = vmatprep.subr.mxu0 0.0
        %2169 = vmatpush1.msra.mxu0 0.0
        %2170 = vmatprep.subr.mxu0 0.0
        %2171 = vmatpush1.msra.mxu0 0.0
        %2172 = vmatprep.subr.mxu0 0.0
        %2173 = vmatpush1.msra.mxu0 %v2120
        %2174 = vmatprep.subr.mxu0 0.0
        %2175 = vmatpush1.msra.mxu0 %v2119
        %2176 = vmatprep.subr.mxu0 0.0
        %2177 = vmatpush1.msra.mxu0 %v2118
        %2178 = vmatprep.subr.mxu0 0.0
        %2179 = vmatpush1.msra.mxu0 %v2117
        %2180 = vmatprep.subr.mxu0 0.0
        %2181 = vmatpush2.msra.mxu0 0.0
        %2182 = vmatprep.subr.mxu0 0.0
        %2183 = vmatpush2.msra.mxu0 0.0
        %2184 = vmatprep.subr.mxu0 0.0
        %2185 = vmatpush2.msra.mxu0 0.0
        %2186 = vmatprep.subr.mxu0 0.0
        %2187 = vmatpush2.msra.mxu0 0.0
        %2188 = vmatprep.subr.mxu0 0.0
        %2189 = vmatpush2.msra.mxu0 0.0
        %2190 = vmatprep.subr.mxu0 0.0
        %2191 = vmatpush2.msra.mxu0 0.0
        %2192 = vmatprep.subr.mxu0 0.0
        %2193 = vmatpush2.msra.mxu0 0.0
        %2194 = vmatprep.subr.mxu0 0.0
        %2195 = vmatpush2.msra.mxu0 0.0
        %2196 = vmatprep.subr.mxu0 0.0
        %2197 = vmatpush2.msra.mxu0 0.0
        %2198 = vmatprep.subr.mxu0 0.0
        %2199 = vmatpush2.msra.mxu0 0.0
        %2200 = vmatprep.subr.mxu0 0.0
        %2201 = vmatpush2.msra.mxu0 0.0
        %2202 = vmatprep.subr.mxu0 0.0
        %2203 = vmatpush2.msra.mxu0 0.0
        %2204 = vmatprep.subr.mxu0 0.0
        %2205 = vmatpush2.msra.mxu0 0.0
        %2206 = vmatprep.subr.mxu0 0.0
        %2207 = vmatpush2.msra.mxu0 0.0
        %2208 = vmatprep.subr.mxu0 0.0
        %2209 = vmatpush2.msra.mxu0 0.0
        %2210 = vmatprep.subr.mxu0 0.0
        %2211 = vmatpush2.msra.mxu0 0.0
        %2212 = vmatprep.mubr.f32.mxu0 0.0
        %2213 = vmatmul.mubr.f32.gmra.mxu0 %v2140
        %v2214 = vpop.f32.mrf.mxu0
        %v2215 = vadd.f32 0.0, %v2214
        %v2216 = vpop.f32.mrf.mxu0
        %2217 = vmatprep.mubr.f32.mxu0 0.0
        %2218 = vmatmul.mubr.f32.gmra.mxu0 %v2143
        %v2219 = vpop.f32.mrf.mxu0
        %v2220 = vadd.f32 0.0, %v2219
        %v2221 = vpop.f32.mrf.mxu0
        %2222 = vmatprep.mubr.f32.mxu0 0.0
        %2223 = vmatmul.mubr.f32.gmra.mxu0 %v2146
        %v2224 = vpop.f32.mrf.mxu0
        %v2225 = vadd.f32 0.0, %v2224
        %v2226 = vpop.f32.mrf.mxu0
        %2227 = vdwg.mxu0
        %v2229 = vsel %vm1027, %v2132, 0
        %v2232 = vsel %vm1027, %v2131, 0
        %v2235 = vsel %vm1027, %v2130, 0
        %2237 = vmatprep.subr.mxu0 0.0
        %2238 = vmatpush1.msra.mxu0 0.0
        %2239 = vmatprep.subr.mxu0 0.0
        %2240 = vmatpush1.msra.mxu0 0.0
        %2241 = vmatprep.subr.mxu0 0.0
        %2242 = vmatpush1.msra.mxu0 0.0
        %2243 = vmatprep.subr.mxu0 0.0
        %2244 = vmatpush1.msra.mxu0 0.0
        %2245 = vmatprep.subr.mxu0 0.0
        %2246 = vmatpush1.msra.mxu0 0.0
        %2247 = vmatprep.subr.mxu0 0.0
        %2248 = vmatpush1.msra.mxu0 0.0
        %2249 = vmatprep.subr.mxu0 0.0
        %2250 = vmatpush1.msra.mxu0 0.0
        %2251 = vmatprep.subr.mxu0 0.0
        %2252 = vmatpush1.msra.mxu0 0.0
        %2253 = vmatprep.subr.mxu0 0.0
        %2254 = vmatpush1.msra.mxu0 0.0
        %2255 = vmatprep.subr.mxu0 0.0
        %2256 = vmatpush1.msra.mxu0 0.0
        %2257 = vmatprep.subr.mxu0 0.0
        %2258 = vmatpush1.msra.mxu0 0.0
        %2259 = vmatprep.subr.mxu0 0.0
        %2260 = vmatpush1.msra.mxu0 0.0
        %2261 = vmatprep.subr.mxu0 0.0
        %2262 = vmatpush1.msra.mxu0 %v2115
        %2263 = vmatprep.subr.mxu0 0.0
        %2264 = vmatpush1.msra.mxu0 %v2114
        %2265 = vmatprep.subr.mxu0 0.0
        %2266 = vmatpush1.msra.mxu0 %v2113
        %2267 = vmatprep.subr.mxu0 0.0
        %2268 = vmatpush1.msra.mxu0 %v2112
        %2269 = vmatprep.subr.mxu0 0.0
        %2270 = vmatpush2.msra.mxu0 0.0
        %2271 = vmatprep.subr.mxu0 0.0
        %2272 = vmatpush2.msra.mxu0 0.0
        %2273 = vmatprep.subr.mxu0 0.0
        %2274 = vmatpush2.msra.mxu0 0.0
        %2275 = vmatprep.subr.mxu0 0.0
        %2276 = vmatpush2.msra.mxu0 0.0
        %2277 = vmatprep.subr.mxu0 0.0
        %2278 = vmatpush2.msra.mxu0 0.0
        %2279 = vmatprep.subr.mxu0 0.0
        %2280 = vmatpush2.msra.mxu0 0.0
        %2281 = vmatprep.subr.mxu0 0.0
        %2282 = vmatpush2.msra.mxu0 0.0
        %2283 = vmatprep.subr.mxu0 0.0
        %2284 = vmatpush2.msra.mxu0 0.0
        %2285 = vmatprep.subr.mxu0 0.0
        %2286 = vmatpush2.msra.mxu0 0.0
        %2287 = vmatprep.subr.mxu0 0.0
        %2288 = vmatpush2.msra.mxu0 0.0
        %2289 = vmatprep.subr.mxu0 0.0
        %2290 = vmatpush2.msra.mxu0 0.0
        %2291 = vmatprep.subr.mxu0 0.0
        %2292 = vmatpush2.msra.mxu0 0.0
        %2293 = vmatprep.subr.mxu0 0.0
        %2294 = vmatpush2.msra.mxu0 0.0
        %2295 = vmatprep.subr.mxu0 0.0
        %2296 = vmatpush2.msra.mxu0 0.0
        %2297 = vmatprep.subr.mxu0 0.0
        %2298 = vmatpush2.msra.mxu0 0.0
        %2299 = vmatprep.subr.mxu0 0.0
        %2300 = vmatpush2.msra.mxu0 0.0
        %2301 = vmatprep.mubr.f32.mxu0 0.0
        %2302 = vmatmul.mubr.f32.gmra.mxu0 %v2229
        %v2303 = vpop.f32.mrf.mxu0
        %v2304 = vadd.f32 %v2215, %v2303
        %v2305 = vpop.f32.mrf.mxu0
        %2306 = vmatprep.mubr.f32.mxu0 0.0
        %2307 = vmatmul.mubr.f32.gmra.mxu0 %v2232
        %v2308 = vpop.f32.mrf.mxu0
        %v2309 = vadd.f32 %v2220, %v2308
        %v2310 = vpop.f32.mrf.mxu0
        %2311 = vmatprep.mubr.f32.mxu0 0.0
        %2312 = vmatmul.mubr.f32.gmra.mxu0 %v2235
        %v2313 = vpop.f32.mrf.mxu0
        %v2314 = vadd.f32 %v2225, %v2313
        %v2315 = vpop.f32.mrf.mxu0
        %2316 = vdwg.mxu0
        %v2318 = vsel %vm1027, %v2137, 0
        %v2321 = vsel %vm1027, %v2136, 0
        %v2324 = vsel %vm1027, %v2138, 0
        %2326 = vmatprep.subr.mxu0 0.0
        %2327 = vmatpush1.msra.mxu0 0.0
        %2328 = vmatprep.subr.mxu0 0.0
        %2329 = vmatpush1.msra.mxu0 0.0
        %2330 = vmatprep.subr.mxu0 0.0
        %2331 = vmatpush1.msra.mxu0 0.0
        %2332 = vmatprep.subr.mxu0 0.0
        %2333 = vmatpush1.msra.mxu0 0.0
        %2334 = vmatprep.subr.mxu0 0.0
        %2335 = vmatpush1.msra.mxu0 0.0
        %2336 = vmatprep.subr.mxu0 0.0
        %2337 = vmatpush1.msra.mxu0 0.0
        %2338 = vmatprep.subr.mxu0 0.0
        %2339 = vmatpush1.msra.mxu0 0.0
        %2340 = vmatprep.subr.mxu0 0.0
        %2341 = vmatpush1.msra.mxu0 0.0
        %2342 = vmatprep.subr.mxu0 0.0
        %2343 = vmatpush1.msra.mxu0 0.0
        %2344 = vmatprep.subr.mxu0 0.0
        %2345 = vmatpush1.msra.mxu0 0.0
        %2346 = vmatprep.subr.mxu0 0.0
        %2347 = vmatpush1.msra.mxu0 0.0
        %2348 = vmatprep.subr.mxu0 0.0
        %2349 = vmatpush1.msra.mxu0 0.0
        %2350 = vmatprep.subr.mxu0 0.0
        %2351 = vmatpush1.msra.mxu0 %v2125
        %2352 = vmatprep.subr.mxu0 0.0
        %2353 = vmatpush1.msra.mxu0 %v2124
        %2354 = vmatprep.subr.mxu0 0.0
        %2355 = vmatpush1.msra.mxu0 %v2123
        %2356 = vmatprep.subr.mxu0 0.0
        %2357 = vmatpush1.msra.mxu0 %v2122
        %2358 = vmatprep.subr.mxu0 0.0
        %2359 = vmatpush2.msra.mxu0 0.0
        %2360 = vmatprep.subr.mxu0 0.0
        %2361 = vmatpush2.msra.mxu0 0.0
        %2362 = vmatprep.subr.mxu0 0.0
        %2363 = vmatpush2.msra.mxu0 0.0
        %2364 = vmatprep.subr.mxu0 0.0
        %2365 = vmatpush2.msra.mxu0 0.0
        %2366 = vmatprep.subr.mxu0 0.0
        %2367 = vmatpush2.msra.mxu0 0.0
        %2368 = vmatprep.subr.mxu0 0.0
        %2369 = vmatpush2.msra.mxu0 0.0
        %2370 = vmatprep.subr.mxu0 0.0
        %2371 = vmatpush2.msra.mxu0 0.0
        %2372 = vmatprep.subr.mxu0 0.0
        %2373 = vmatpush2.msra.mxu0 0.0
        %2374 = vmatprep.subr.mxu0 0.0
        %2375 = vmatpush2.msra.mxu0 0.0
        %2376 = vmatprep.subr.mxu0 0.0
        %2377 = vmatpush2.msra.mxu0 0.0
        %2378 = vmatprep.subr.mxu0 0.0
        %2379 = vmatpush2.msra.mxu0 0.0
        %2380 = vmatprep.subr.mxu0 0.0
        %2381 = vmatpush2.msra.mxu0 0.0
        %2382 = vmatprep.subr.mxu0 0.0
        %2383 = vmatpush2.msra.mxu0 0.0
        %2384 = vmatprep.subr.mxu0 0.0
        %2385 = vmatpush2.msra.mxu0 0.0
        %2386 = vmatprep.subr.mxu0 0.0
        %2387 = vmatpush2.msra.mxu0 0.0
        %2388 = vmatprep.subr.mxu0 0.0
        %2389 = vmatpush2.msra.mxu0 0.0
        %2390 = vmatprep.mubr.f32.mxu0 0.0
        %2391 = vmatmul.mubr.f32.gmra.mxu0 %v2318
        %v2392 = vpop.f32.mrf.mxu0
        %v2393 = vadd.f32 0.0, %v2392
        %v2394 = vpop.f32.mrf.mxu0
        %2395 = vmatprep.mubr.f32.mxu0 0.0
        %2396 = vmatmul.mubr.f32.gmra.mxu0 %v2321
        %v2397 = vpop.f32.mrf.mxu0
        %v2398 = vadd.f32 0.0, %v2397
        %v2399 = vpop.f32.mrf.mxu0
        %2400 = vmatprep.mubr.f32.mxu0 0.0
        %2401 = vmatmul.mubr.f32.gmra.mxu0 %v2324
        %v2402 = vpop.f32.mrf.mxu0
        %v2403 = vadd.f32 0.0, %v2402
        %v2404 = vpop.f32.mrf.mxu0
        %2405 = vdwg.mxu0
        %v2406 = vadd.f32 %v2304, %v2393
        %v2407 = vadd.f32 %v2309, %v2398
        %v2408 = vadd.f32 %v2314, %v2403
        %v2410 = vlaneseq
        %v2411 = vshrl.u32 %v2410, 7
        %v2412 = vsub.s32 0, %v2411
        %v2413 = vrot.slane %v2126, %v2412
        %v2415 = vadd.f32 %v2406, %v2413
        %v2416 = vadd.f32 %v2407, %v2413
        %v2417 = vadd.f32 %v2408, %v2413
        %vm2418 = vcmask 228352
        %2419 = vst.msk [vmem:[%s492] sm:$0xff] %vm2418, %v2415
        %2420 = vst.msk [vmem:[%s492 + $0x8] sm:$0xff] %vm2418, %v2416
        %2421 = vst.msk [vmem:[%s492 + $0x10] sm:$0xff] %vm2418, %v2417
        %s2422 = smul.u32 3, %s29
        %p2423 = scmp.lt.s32.totalorder %s2422, 5
        %s2424 = scalar_select %p2423, %s2422, 5
        %s2425 = smul.addr %s2424, 8
        %s2426 = scalar_lea.vmem %s13, %s2425
        %s2427 = sand.u32 %s346, 1
        %s2428 = scalar_lea.sflag [#allocation3], %s2427
        %s2429 = sand.u32 %s346, 1
        %s2430 = smul.addr %s2429, 4
        %s2431 = scalar_lea.vmem [#allocation2], %s2430
        // Predicated region
        $region73: #{decoder_forward.1} parent=71 // pred_check
          %p2432 = pneg %p330
        $region74: #{decoder_forward.1} parent=71 // pred_check_branch
          %2434 = sbr.rel (%p2432) target = $region76
        $region75: #{decoder_forward.1} parent=71 // pred_region
          %s2435 = smul.u32 3, %s29
        $region76: #{decoder_forward.1} parent=71 // pred_fallthru
          _
        // Predicated region
        $region77: #{decoder_forward.1} parent=71 // pred_check
          %p2436 = pneg %p356
        $region78: #{decoder_forward.1} parent=71 // pred_check_branch
          %2438 = sbr.rel (%p2436) target = $region80
        $region79: #{decoder_forward.1} parent=71 // pred_region
          %s2440 = ssub.s32 64, 64
          %2441 = vsyncadd %s2428, %s2440
          %s2442 = smul.addr %s29, 64
          %s2443 = scalar_lea.hbm %s14, %s2442
          %s2445 = sshll.u32 %s2431, 4
          %s2446 = int_to_ptr.vmem [resolvable:$true] %s2445
          %2448 = dma.vmem_to_hbm [thread:$0]  %s2446, 64, %s2443, %s2428
        $region80: #{decoder_forward.1} parent=71 // pred_fallthru
          _
      $region72: #{decoder_forward.1} parent=5 // pred_fallthru
        _
      %p2449 = scmp.le.s32.totalorder 2, %s24
      // Predicated region
      $region81: #{decoder_forward.1} parent=5 // pred_check
        %p2450 = pneg %p2449
      $region82: #{decoder_forward.1} parent=5 // pred_check_branch
        %2452 = sbr.rel (%p2450) target = $region84
      $region83: #{decoder_forward.1} parent=5 // pred_region
        %s2453 = ssub.s32 %s24, 2
        // Predicated region
        $region85: #{decoder_forward.1} parent=83 // pred_check
          %p2454 = pneg %p336
        $region86: #{decoder_forward.1} parent=83 // pred_check_branch
          %2456 = sbr.rel (%p2454) target = $region88
        $region87: #{decoder_forward.1} parent=83 // pred_region
          %s2457 = smul.u32 3, %s30
          %p2458 = scmp.lt.s32.totalorder %s2457, 5
          %s2459 = scalar_select %p2458, %s2457, 5
          %s2460 = smul.addr %s2459, 8
          %s2461 = scalar_lea.vmem %s13, %s2460
        $region88: #{decoder_forward.1} parent=83 // pred_fallthru
          _
        // Predicated region
        $region89: #{decoder_forward.1} parent=83 // pred_check
          %p2462 = pneg %p362
        $region90: #{decoder_forward.1} parent=83 // pred_check_branch
          %2464 = sbr.rel (%p2462) target = $region92
        $region91: #{decoder_forward.1} parent=83 // pred_region
          %s2465 = sand.u32 %s347, 1
          %s2466 = scalar_lea.sflag [#allocation3], %s2465
          %s2467 = sand.u32 %s347, 1
          %s2468 = smul.addr %s2467, 4
          %s2469 = scalar_lea.vmem [#allocation2], %s2468
          %2470 = dma.done %s2466, 64
        $region92: #{decoder_forward.1} parent=83 // pred_fallthru
          _
      $region84: #{decoder_forward.1} parent=5 // pred_fallthru
        _
    $region6: #{decoder_forward.1} parent=1 // loop_footer
      %s28 = sadd.s32 1, %s24
    $region7: #{decoder_forward.1} parent=1 // loop_footer_branch
      %23 = sbr.rel target = $region3
    $region8: #{decoder_forward.1} parent=1 // loop_exit
      _
    %2471 = vsyncpa [#allocation3], 1
    %s2472 = scalar_lea.sflag [#allocation3], 1
    %2473 = vsyncpa %s2472, 1

</llo_original>
